<compile_context>
chip_gen: v7x
topology: tpu7x:2x2x1
jax: 0.10.0
libtpu: 0.0.40
codegen_flags: <defaults>
</compile_context>

<pallas_src>
import functools

import jax
import jax.numpy as jnp
from jax.experimental import pallas as pl
from jax.experimental.pallas import tpu as pltpu

# ---- synthetic Config ----
FLAT_OUT_FEAT_SIZE = 32   # Config.flat_out_feat_size
NUM_TYPES = 3             # Config.num_types
NUM_TAGS = 4              # Config.num_tag_each_type

LANE_BLOCK = 128          # lane tile for the batch*num_types axis


# --------------------------------------------------------------------------
# Pallas kernel: CRF Viterbi decode (torchcrf semantics, right-padded masks)
#   emis_ref   : (S, K, NB) f32   emissions; tags on sublanes, batch on lanes
#   mask_ref   : (S, 1, NB) i32   1 for valid steps (contiguous prefix)
#   seq_end_ref: (1, NB) i32      sum(mask)-1 per lane; -1 for padding lanes
#   start_ref  : (K, 1)  f32      CRF start transitions
#   end_ref    : (K, 1)  f32      CRF end transitions
#   trans_t_ref: (K, K)  f32      trans_t[next, prev] = trans[prev, next]
#   tags_ref   : (S, NB) i32 out  decoded tag per step; 0 past each length
#   hist_ref   : (S, K, NB) i32   VMEM scratch (hist[0] never read)
# --------------------------------------------------------------------------
def _viterbi_kernel(emis_ref, mask_ref, seq_end_ref, start_ref, end_ref,
                    trans_t_ref, tags_ref, hist_ref):
    S, K, NB = emis_ref.shape

    # ---- hoisted loop invariants ----
    trans_t = trans_t_ref[...]                                  # (K, K)
    trans_cols = [trans_t[:, p:p + 1] for p in range(K)]        # each (K, 1)
    seq_end = seq_end_ref[...]                                  # (1, NB)

    # ---- forward recursion (fully unrolled; S is compile-time) ----
    score = start_ref[...] + emis_ref[0]                        # (K, NB)
    for t in range(1, S):
        em_t = emis_ref[t]                                      # (K, NB)
        # max/argmax over previous tag, unrolled into strict-greater selects
        # (strict '>' keeps the first index on ties, matching torch.max).
        best = score[0:1, :] + trans_cols[0]                    # (K, NB)
        idx = jnp.zeros((K, NB), dtype=jnp.int32)               # (K, NB)
        for p in range(1, K):
            cand = score[p:p + 1, :] + trans_cols[p]
            take = cand > best
            best = jnp.where(take, cand, best)
            idx = jnp.where(take, p, idx)
        hist_ref[t] = idx
        nxt = best + em_t
        score = jnp.where(mask_ref[t] > 0, nxt, score)          # freeze padded

    score = score + end_ref[...]                                # (K, NB)

    # ---- best final tag: argmax over the K sublanes (unrolled selects) ----
    best_val = score[0:1, :]                                    # (1, NB)
    best_tag = jnp.zeros_like(seq_end)                          # (1, NB) i32
    for k in range(1, K):
        cand = score[k:k + 1, :]
        take = cand > best_val
        best_val = jnp.where(take, cand, best_val)
        best_tag = jnp.where(take, k, best_tag)

    # ---- backward trace (unrolled); lane-dense (1, NB) row stores ----
    cur = best_tag
    for i in range(S):
        t = S - 1 - i
        cur = jnp.where(seq_end == t, best_tag, cur)            # start of trace
        valid = seq_end >= t                                    # (1, NB) bool
        tags_ref[t:t + 1, :] = jnp.where(valid, cur, 0)
        if t >= 1:
            h = hist_ref[t]                                     # (K, NB)
            # prev[n] = h[cur[n], n] via K-way select (no iota / reduces)
            prev = h[0:1, :]
            for k in range(1, K):
                prev = jnp.where(cur == k, h[k:k + 1, :], prev)
            cur = jnp.where(valid, prev, cur)


def crf_viterbi_decode(emis_skn, mask_s1n, seq_end_1n, start, end, trans):
    """emis_skn: (S, K, Npad) f32, Npad a multiple of LANE_BLOCK."""
    S, K, Npad = emis_skn.shape
    n_blocks = Npad // LANE_BLOCK
    grid_spec = pltpu.PrefetchScalarGridSpec(
        num_scalar_prefetch=0,
        grid=(n_blocks,),
        in_specs=[
            pl.BlockSpec((S, K, LANE_BLOCK), lambda i: (0, 0, i)),
            pl.BlockSpec((S, 1, LANE_BLOCK), lambda i: (0, 0, i)),
            pl.BlockSpec((1, LANE_BLOCK), lambda i: (0, i)),
            pl.BlockSpec((K, 1), lambda i: (0, 0)),
            pl.BlockSpec((K, 1), lambda i: (0, 0)),
            pl.BlockSpec((K, K), lambda i: (0, 0)),
        ],
        out_specs=pl.BlockSpec((S, LANE_BLOCK), lambda i: (0, i)),
        scratch_shapes=[pltpu.VMEM((S, K, LANE_BLOCK), jnp.int32)],
    )
    return pl.pallas_call(
        _viterbi_kernel,
        out_shape=jax.ShapeDtypeStruct((S, Npad), jnp.int32),
        grid_spec=grid_spec,
        compiler_params=pltpu.CompilerParams(
            dimension_semantics=("parallel",)),
    )(emis_skn.astype(jnp.float32),
      mask_s1n.astype(jnp.int32),
      seq_end_1n.astype(jnp.int32),
      start.reshape(K, 1).astype(jnp.float32),
      end.reshape(K, 1).astype(jnp.float32),
      jnp.transpose(trans).astype(jnp.float32))   # trans_t[next, prev]


# --------------------------------------------------------------------------
# StructuredOut.forward
# --------------------------------------------------------------------------
@functools.partial(jax.jit, static_argnames=("en_pred",))
def structured_out_forward(text_vec, mask, params, en_pred=True):
    B, S, H = text_vec.shape
    T, K = NUM_TYPES, NUM_TAGS

    # cal_emission: tiny (B*S, H) @ (H, T*K) projection — left to XLA (a
    # standalone pallas_call here is launch-overhead dominated).
    x2d = text_vec.astype(jnp.float32).reshape(B * S, H)
    em2d = jnp.dot(x2d, params["w_t"],
                   preferred_element_type=jnp.float32) + params["b"]
    emission = em2d.reshape(B, S, T, K).transpose(0, 2, 1, 3)    # (B, T, S, K)

    pred = None
    if en_pred:
        N = B * T
        Npad = ((N + LANE_BLOCK - 1) // LANE_BLOCK) * LANE_BLOCK
        # Viterbi layout: (S, K, Npad) — time leading, tags on sublanes,
        # batch*type on lanes; zero-pad the lane axis.
        emis_skn = emission.transpose(2, 3, 0, 1).reshape(S, K, N)
        emis_skn = jnp.pad(emis_skn, ((0, 0), (0, 0), (0, Npad - N)))
        mask_i = mask.astype(jnp.int32)                          # (B, S)
        mask_sn = jnp.broadcast_to(
            mask_i[:, None, :], (B, T, S)).reshape(N, S).T       # (S, N)
        mask_sn = jnp.pad(mask_sn, ((0, 0), (0, Npad - N)))      # (S, Npad)
        # mask is assumed to be a contiguous prefix (right padding), length>=1
        seq_end = (jnp.sum(mask_sn, axis=0, dtype=jnp.int32) - 1)[None, :]

        tags = crf_viterbi_decode(emis_skn, mask_sn[:, None, :], seq_end,
                                  params["start"], params["end"],
                                  params["trans"])               # (S, Npad)
        pred = tags[:, :N].T.reshape(B, T, S)                    # (B, T, S)
        # TODO(synk): find_entity() is Python list post-processing; left out.

    return {"emission": emission, "pred": pred}


def init_params(key):
    k1, k2, k3, k4, k5 = jax.random.split(key, 5)
    O = NUM_TYPES * NUM_TAGS
    w = jax.random.normal(k1, (O, FLAT_OUT_FEAT_SIZE), jnp.float32) * 0.1
    b = jax.random.normal(k2, (O,), jnp.float32) * 0.1
    start = jax.random.uniform(k3, (NUM_TAGS,), jnp.float32, -0.1, 0.1)
    end = jax.random.uniform(k4, (NUM_TAGS,), jnp.float32, -0.1, 0.1)
    trans = jax.random.uniform(k5, (NUM_TAGS, NUM_TAGS), jnp.float32, -0.1, 0.1)
    return {"w_t": jnp.transpose(w), "b": b,
            "start": start, "end": end, "trans": trans}


def _viterbi_ref(emis, mask, start, end, trans):
    """Pure NumPy torchcrf-style Viterbi (same f32 add ordering as kernel)."""
    import numpy as np
    N, S, K = emis.shape
    out = np.zeros((N, S), dtype=np.int32)
    for n in range(N):
        L = int(mask[n].sum())
        score = (start + emis[n, 0]).astype(np.float32)
        hist = []
        for t in range(1, L):
            brd = (score[:, None] + trans).astype(np.float32)   # [prev, next]
            hist.append(brd.argmax(axis=0).astype(np.int32))
            score = (brd.max(axis=0) + emis[n, t]).astype(np.float32)
        score = (score + end).astype(np.float32)
        best = int(score.argmax())
        tags = [best]
        for h in reversed(hist):
            best = int(h[best])
            tags.append(best)
        tags.reverse()
        out[n, :L] = tags
    return out


if __name__ == "__main__":
    import numpy as np

    B, S = 2, 8
    key = jax.random.PRNGKey(0)
    kp, kx = jax.random.split(key)
    params = init_params(kp)

    text_vec = jax.random.normal(kx, (B, S, FLAT_OUT_FEAT_SIZE), jnp.float32)
    lengths = jnp.array([8, 5], dtype=jnp.int32)
    mask = (jnp.arange(S)[None, :] < lengths[:, None]).astype(jnp.int32)

    out = structured_out_forward(text_vec, mask, params, en_pred=True)
    jax.block_until_ready(out["emission"])
    jax.block_until_ready(out["pred"])

    assert out["emission"].shape == (B, NUM_TYPES, S, NUM_TAGS)
    assert out["pred"].shape == (B, NUM_TYPES, S)
    assert out["pred"].dtype == jnp.int32

    # correctness check against a pure NumPy torchcrf-style reference
    emission_np = np.asarray(out["emission"], dtype=np.float32)
    pred_np = np.asarray(out["pred"]).reshape(B * NUM_TYPES, S)
    mask_np = np.asarray(mask)
    emis_flat = emission_np.reshape(B * NUM_TYPES, S, NUM_TAGS)
    mask_flat = np.broadcast_to(
        mask_np[:, None, :], (B, NUM_TYPES, S)).reshape(-1, S)
    ref = _viterbi_ref(emis_flat, mask_flat,
                       np.asarray(params["start"], np.float32),
                       np.asarray(params["end"], np.float32),
                       np.asarray(params["trans"], np.float32))
    np.testing.assert_array_equal(pred_np, ref)

    print("KERNEL_OK")
</pallas_src>

<mosaic_0001>
module attributes {stable_mosaic.version = 11 : i64} {
  func.func @_viterbi_kernel(%arg0: i32, %arg1: memref<8x4x128xf32, #tpu.memory_space<vmem>>, %arg2: memref<8x1x128xi32, #tpu.memory_space<vmem>>, %arg3: memref<1x128xi32, #tpu.memory_space<vmem>>, %arg4: memref<4x1xf32, #tpu.memory_space<vmem>>, %arg5: memref<4x1xf32, #tpu.memory_space<vmem>>, %arg6: memref<4x4xf32, #tpu.memory_space<vmem>>, %arg7: memref<8x128xi32, #tpu.memory_space<vmem>>, %arg8: memref<8x4x128xi32, #tpu.memory_space<vmem>>) attributes {dimension_semantics = [#tpu.dimension_semantics<parallel>], iteration_bounds = array<i64: 1>, scalar_prefetch = 0 : i64, scratch_operands = 1 : i64, tpu.core_type = #tpu.core_type<tc>, window_params = [{transform_indices = @transform_0, window_bounds = array<i64: 8, 4, 128>}, {transform_indices = @transform_1, window_bounds = array<i64: 8, 1, 128>}, {transform_indices = @transform_2, window_bounds = array<i64: 1, 128>}, {pipeline_mode = #tpu.pipeline_mode<synchronous>, transform_indices = @transform_3, window_bounds = array<i64: 4, 1>}, {pipeline_mode = #tpu.pipeline_mode<synchronous>, transform_indices = @transform_4, window_bounds = array<i64: 4, 1>}, {pipeline_mode = #tpu.pipeline_mode<synchronous>, transform_indices = @transform_5, window_bounds = array<i64: 4, 4>}, {transform_indices = @transform_6, window_bounds = array<i64: 8, 128>}]} {
    %c0 = arith.constant 0 : index
    %c0_0 = arith.constant 0 : index
    %0 = vector.load %arg6[%c0, %c0_0] : memref<4x4xf32, #tpu.memory_space<vmem>>, vector<4x4xf32>
    %1 = vector.extract_strided_slice %0 {offsets = [0, 0], sizes = [4, 1], strides = [1, 1]} : vector<4x4xf32> to vector<4x1xf32>
    %2 = vector.extract_strided_slice %0 {offsets = [0, 1], sizes = [4, 1], strides = [1, 1]} : vector<4x4xf32> to vector<4x1xf32>
    %3 = vector.extract_strided_slice %0 {offsets = [0, 2], sizes = [4, 1], strides = [1, 1]} : vector<4x4xf32> to vector<4x1xf32>
    %4 = vector.extract_strided_slice %0 {offsets = [0, 3], sizes = [4, 1], strides = [1, 1]} : vector<4x4xf32> to vector<4x1xf32>
    %c0_1 = arith.constant 0 : index
    %c0_2 = arith.constant 0 : index
    %5 = vector.load %arg3[%c0_1, %c0_2] : memref<1x128xi32, #tpu.memory_space<vmem>>, vector<1x128xi32>
    %c0_3 = arith.constant 0 : index
    %c0_4 = arith.constant 0 : index
    %6 = vector.load %arg4[%c0_3, %c0_4] : memref<4x1xf32, #tpu.memory_space<vmem>>, vector<4x1xf32>
    %c0_5 = arith.constant 0 : index
    %c0_6 = arith.constant 0 : index
    %c0_7 = arith.constant 0 : index
    %7 = vector.load %arg1[%c0_5, %c0_6, %c0_7] : memref<8x4x128xf32, #tpu.memory_space<vmem>>, vector<1x4x128xf32>
    %8 = vector.shape_cast %7 : vector<1x4x128xf32> to vector<4x128xf32>
    %9 = vector.broadcast %6 : vector<4x1xf32> to vector<4x128xf32>
    %10 = arith.addf %9, %8 : vector<4x128xf32>
    %c1 = arith.constant 1 : index
    %c0_8 = arith.constant 0 : index
    %c0_9 = arith.constant 0 : index
    %11 = vector.load %arg1[%c1, %c0_8, %c0_9] : memref<8x4x128xf32, #tpu.memory_space<vmem>>, vector<1x4x128xf32>
    %12 = vector.shape_cast %11 : vector<1x4x128xf32> to vector<4x128xf32>
    %13 = vector.extract_strided_slice %10 {offsets = [0, 0], sizes = [1, 128], strides = [1, 1]} : vector<4x128xf32> to vector<1x128xf32>
    %14 = vector.broadcast %13 : vector<1x128xf32> to vector<4x128xf32>
    %15 = vector.broadcast %1 : vector<4x1xf32> to vector<4x128xf32>
    %16 = arith.addf %14, %15 : vector<4x128xf32>
    %c0_i32 = arith.constant 0 : i32
    %17 = vector.broadcast %c0_i32 : i32 to vector<4x128xi32>
    %18 = vector.extract_strided_slice %10 {offsets = [1, 0], sizes = [1, 128], strides = [1, 1]} : vector<4x128xf32> to vector<1x128xf32>
    %19 = vector.broadcast %18 : vector<1x128xf32> to vector<4x128xf32>
    %20 = vector.broadcast %2 : vector<4x1xf32> to vector<4x128xf32>
    %21 = arith.addf %19, %20 : vector<4x128xf32>
    %22 = arith.cmpf ogt, %21, %16 : vector<4x128xf32>
    %23 = arith.select %22, %21, %16 : vector<4x128xi1>, vector<4x128xf32>
    %c1_i32 = arith.constant 1 : i32
    %24 = vector.broadcast %c1_i32 : i32 to vector<4x128xi32>
    %25 = arith.select %22, %24, %17 : vector<4x128xi1>, vector<4x128xi32>
    %26 = vector.extract_strided_slice %10 {offsets = [2, 0], sizes = [1, 128], strides = [1, 1]} : vector<4x128xf32> to vector<1x128xf32>
    %27 = vector.broadcast %26 : vector<1x128xf32> to vector<4x128xf32>
    %28 = vector.broadcast %3 : vector<4x1xf32> to vector<4x128xf32>
    %29 = arith.addf %27, %28 : vector<4x128xf32>
    %30 = arith.cmpf ogt, %29, %23 : vector<4x128xf32>
    %31 = arith.select %30, %29, %23 : vector<4x128xi1>, vector<4x128xf32>
    %c2_i32 = arith.constant 2 : i32
    %32 = vector.broadcast %c2_i32 : i32 to vector<4x128xi32>
    %33 = arith.select %30, %32, %25 : vector<4x128xi1>, vector<4x128xi32>
    %34 = vector.extract_strided_slice %10 {offsets = [3, 0], sizes = [1, 128], strides = [1, 1]} : vector<4x128xf32> to vector<1x128xf32>
    %35 = vector.broadcast %34 : vector<1x128xf32> to vector<4x128xf32>
    %36 = vector.broadcast %4 : vector<4x1xf32> to vector<4x128xf32>
    %37 = arith.addf %35, %36 : vector<4x128xf32>
    %38 = arith.cmpf ogt, %37, %31 : vector<4x128xf32>
    %39 = arith.select %38, %37, %31 : vector<4x128xi1>, vector<4x128xf32>
    %c3_i32 = arith.constant 3 : i32
    %40 = vector.broadcast %c3_i32 : i32 to vector<4x128xi32>
    %41 = arith.select %38, %40, %33 : vector<4x128xi1>, vector<4x128xi32>
    %c1_10 = arith.constant 1 : index
    %c0_11 = arith.constant 0 : index
    %c0_12 = arith.constant 0 : index
    %42 = vector.load %arg8[%c1_10, %c0_11, %c0_12] : memref<8x4x128xi32, #tpu.memory_space<vmem>>, vector<1x4x128xi32>
    %43 = vector.shape_cast %42 : vector<1x4x128xi32> to vector<4x128xi32>
    %44 = vector.shape_cast %41 : vector<4x128xi32> to vector<1x4x128xi32>
    tpu.vector_store %arg8[%c1_10, %c0_11, %c0_12], %44 {strides = array<i32>} : memref<8x4x128xi32, #tpu.memory_space<vmem>>, vector<1x4x128xi32>,
    %45 = arith.addf %39, %12 : vector<4x128xf32>
    %c1_13 = arith.constant 1 : index
    %c0_14 = arith.constant 0 : index
    %c0_15 = arith.constant 0 : index
    %46 = vector.load %arg2[%c1_13, %c0_14, %c0_15] : memref<8x1x128xi32, #tpu.memory_space<vmem>>, vector<1x1x128xi32>
    %47 = vector.shape_cast %46 : vector<1x1x128xi32> to vector<1x128xi32>
    %c0_i32_16 = arith.constant 0 : i32
    %48 = vector.broadcast %c0_i32_16 : i32 to vector<1x128xi32>
    %49 = arith.cmpi sgt, %47, %48 : vector<1x128xi32>
    %50 = vector.shape_cast %49 : vector<1x128xi1> to vector<1x128xi1>
    %51 = vector.broadcast %50 : vector<1x128xi1> to vector<4x128xi1>
    %52 = arith.select %51, %45, %10 : vector<4x128xi1>, vector<4x128xf32>
    %c2 = arith.constant 2 : index
    %c0_17 = arith.constant 0 : index
    %c0_18 = arith.constant 0 : index
    %53 = vector.load %arg1[%c2, %c0_17, %c0_18] : memref<8x4x128xf32, #tpu.memory_space<vmem>>, vector<1x4x128xf32>
    %54 = vector.shape_cast %53 : vector<1x4x128xf32> to vector<4x128xf32>
    %55 = vector.extract_strided_slice %52 {offsets = [0, 0], sizes = [1, 128], strides = [1, 1]} : vector<4x128xf32> to vector<1x128xf32>
    %56 = vector.broadcast %55 : vector<1x128xf32> to vector<4x128xf32>
    %57 = vector.broadcast %1 : vector<4x1xf32> to vector<4x128xf32>
    %58 = arith.addf %56, %57 : vector<4x128xf32>
    %c0_i32_19 = arith.constant 0 : i32
    %59 = vector.broadcast %c0_i32_19 : i32 to vector<4x128xi32>
    %60 = vector.extract_strided_slice %52 {offsets = [1, 0], sizes = [1, 128], strides = [1, 1]} : vector<4x128xf32> to vector<1x128xf32>
    %61 = vector.broadcast %60 : vector<1x128xf32> to vector<4x128xf32>
    %62 = vector.broadcast %2 : vector<4x1xf32> to vector<4x128xf32>
    %63 = arith.addf %61, %62 : vector<4x128xf32>
    %64 = arith.cmpf ogt, %63, %58 : vector<4x128xf32>
    %65 = arith.select %64, %63, %58 : vector<4x128xi1>, vector<4x128xf32>
    %c1_i32_20 = arith.constant 1 : i32
    %66 = vector.broadcast %c1_i32_20 : i32 to vector<4x128xi32>
    %67 = arith.select %64, %66, %59 : vector<4x128xi1>, vector<4x128xi32>
    %68 = vector.extract_strided_slice %52 {offsets = [2, 0], sizes = [1, 128], strides = [1, 1]} : vector<4x128xf32> to vector<1x128xf32>
    %69 = vector.broadcast %68 : vector<1x128xf32> to vector<4x128xf32>
    %70 = vector.broadcast %3 : vector<4x1xf32> to vector<4x128xf32>
    %71 = arith.addf %69, %70 : vector<4x128xf32>
    %72 = arith.cmpf ogt, %71, %65 : vector<4x128xf32>
    %73 = arith.select %72, %71, %65 : vector<4x128xi1>, vector<4x128xf32>
    %c2_i32_21 = arith.constant 2 : i32
    %74 = vector.broadcast %c2_i32_21 : i32 to vector<4x128xi32>
    %75 = arith.select %72, %74, %67 : vector<4x128xi1>, vector<4x128xi32>
    %76 = vector.extract_strided_slice %52 {offsets = [3, 0], sizes = [1, 128], strides = [1, 1]} : vector<4x128xf32> to vector<1x128xf32>
    %77 = vector.broadcast %76 : vector<1x128xf32> to vector<4x128xf32>
    %78 = vector.broadcast %4 : vector<4x1xf32> to vector<4x128xf32>
    %79 = arith.addf %77, %78 : vector<4x128xf32>
    %80 = arith.cmpf ogt, %79, %73 : vector<4x128xf32>
    %81 = arith.select %80, %79, %73 : vector<4x128xi1>, vector<4x128xf32>
    %c3_i32_22 = arith.constant 3 : i32
    %82 = vector.broadcast %c3_i32_22 : i32 to vector<4x128xi32>
    %83 = arith.select %80, %82, %75 : vector<4x128xi1>, vector<4x128xi32>
    %c2_23 = arith.constant 2 : index
    %c0_24 = arith.constant 0 : index
    %c0_25 = arith.constant 0 : index
    %84 = vector.load %arg8[%c2_23, %c0_24, %c0_25] : memref<8x4x128xi32, #tpu.memory_space<vmem>>, vector<1x4x128xi32>
    %85 = vector.shape_cast %84 : vector<1x4x128xi32> to vector<4x128xi32>
    %86 = vector.shape_cast %83 : vector<4x128xi32> to vector<1x4x128xi32>
    tpu.vector_store %arg8[%c2_23, %c0_24, %c0_25], %86 {strides = array<i32>} : memref<8x4x128xi32, #tpu.memory_space<vmem>>, vector<1x4x128xi32>,
    %87 = arith.addf %81, %54 : vector<4x128xf32>
    %c2_26 = arith.constant 2 : index
    %c0_27 = arith.constant 0 : index
    %c0_28 = arith.constant 0 : index
    %88 = vector.load %arg2[%c2_26, %c0_27, %c0_28] : memref<8x1x128xi32, #tpu.memory_space<vmem>>, vector<1x1x128xi32>
    %89 = vector.shape_cast %88 : vector<1x1x128xi32> to vector<1x128xi32>
    %c0_i32_29 = arith.constant 0 : i32
    %90 = vector.broadcast %c0_i32_29 : i32 to vector<1x128xi32>
    %91 = arith.cmpi sgt, %89, %90 : vector<1x128xi32>
    %92 = vector.shape_cast %91 : vector<1x128xi1> to vector<1x128xi1>
    %93 = vector.broadcast %92 : vector<1x128xi1> to vector<4x128xi1>
    %94 = arith.select %93, %87, %52 : vector<4x128xi1>, vector<4x128xf32>
    %c3 = arith.constant 3 : index
    %c0_30 = arith.constant 0 : index
    %c0_31 = arith.constant 0 : index
    %95 = vector.load %arg1[%c3, %c0_30, %c0_31] : memref<8x4x128xf32, #tpu.memory_space<vmem>>, vector<1x4x128xf32>
    %96 = vector.shape_cast %95 : vector<1x4x128xf32> to vector<4x128xf32>
    %97 = vector.extract_strided_slice %94 {offsets = [0, 0], sizes = [1, 128], strides = [1, 1]} : vector<4x128xf32> to vector<1x128xf32>
    %98 = vector.broadcast %97 : vector<1x128xf32> to vector<4x128xf32>
    %99 = vector.broadcast %1 : vector<4x1xf32> to vector<4x128xf32>
    %100 = arith.addf %98, %99 : vector<4x128xf32>
    %c0_i32_32 = arith.constant 0 : i32
    %101 = vector.broadcast %c0_i32_32 : i32 to vector<4x128xi32>
    %102 = vector.extract_strided_slice %94 {offsets = [1, 0], sizes = [1, 128], strides = [1, 1]} : vector<4x128xf32> to vector<1x128xf32>
    %103 = vector.broadcast %102 : vector<1x128xf32> to vector<4x128xf32>
    %104 = vector.broadcast %2 : vector<4x1xf32> to vector<4x128xf32>
    %105 = arith.addf %103, %104 : vector<4x128xf32>
    %106 = arith.cmpf ogt, %105, %100 : vector<4x128xf32>
    %107 = arith.select %106, %105, %100 : vector<4x128xi1>, vector<4x128xf32>
    %c1_i32_33 = arith.constant 1 : i32
    %108 = vector.broadcast %c1_i32_33 : i32 to vector<4x128xi32>
    %109 = arith.select %106, %108, %101 : vector<4x128xi1>, vector<4x128xi32>
    %110 = vector.extract_strided_slice %94 {offsets = [2, 0], sizes = [1, 128], strides = [1, 1]} : vector<4x128xf32> to vector<1x128xf32>
    %111 = vector.broadcast %110 : vector<1x128xf32> to vector<4x128xf32>
    %112 = vector.broadcast %3 : vector<4x1xf32> to vector<4x128xf32>
    %113 = arith.addf %111, %112 : vector<4x128xf32>
    %114 = arith.cmpf ogt, %113, %107 : vector<4x128xf32>
    %115 = arith.select %114, %113, %107 : vector<4x128xi1>, vector<4x128xf32>
    %c2_i32_34 = arith.constant 2 : i32
    %116 = vector.broadcast %c2_i32_34 : i32 to vector<4x128xi32>
    %117 = arith.select %114, %116, %109 : vector<4x128xi1>, vector<4x128xi32>
    %118 = vector.extract_strided_slice %94 {offsets = [3, 0], sizes = [1, 128], strides = [1, 1]} : vector<4x128xf32> to vector<1x128xf32>
    %119 = vector.broadcast %118 : vector<1x128xf32> to vector<4x128xf32>
    %120 = vector.broadcast %4 : vector<4x1xf32> to vector<4x128xf32>
    %121 = arith.addf %119, %120 : vector<4x128xf32>
    %122 = arith.cmpf ogt, %121, %115 : vector<4x128xf32>
    %123 = arith.select %122, %121, %115 : vector<4x128xi1>, vector<4x128xf32>
    %c3_i32_35 = arith.constant 3 : i32
    %124 = vector.broadcast %c3_i32_35 : i32 to vector<4x128xi32>
    %125 = arith.select %122, %124, %117 : vector<4x128xi1>, vector<4x128xi32>
    %c3_36 = arith.constant 3 : index
    %c0_37 = arith.constant 0 : index
    %c0_38 = arith.constant 0 : index
    %126 = vector.load %arg8[%c3_36, %c0_37, %c0_38] : memref<8x4x128xi32, #tpu.memory_space<vmem>>, vector<1x4x128xi32>
    %127 = vector.shape_cast %126 : vector<1x4x128xi32> to vector<4x128xi32>
    %128 = vector.shape_cast %125 : vector<4x128xi32> to vector<1x4x128xi32>
    tpu.vector_store %arg8[%c3_36, %c0_37, %c0_38], %128 {strides = array<i32>} : memref<8x4x128xi32, #tpu.memory_space<vmem>>, vector<1x4x128xi32>,
    %129 = arith.addf %123, %96 : vector<4x128xf32>
    %c3_39 = arith.constant 3 : index
    %c0_40 = arith.constant 0 : index
    %c0_41 = arith.constant 0 : index
    %130 = vector.load %arg2[%c3_39, %c0_40, %c0_41] : memref<8x1x128xi32, #tpu.memory_space<vmem>>, vector<1x1x128xi32>
    %131 = vector.shape_cast %130 : vector<1x1x128xi32> to vector<1x128xi32>
    %c0_i32_42 = arith.constant 0 : i32
    %132 = vector.broadcast %c0_i32_42 : i32 to vector<1x128xi32>
    %133 = arith.cmpi sgt, %131, %132 : vector<1x128xi32>
    %134 = vector.shape_cast %133 : vector<1x128xi1> to vector<1x128xi1>
    %135 = vector.broadcast %134 : vector<1x128xi1> to vector<4x128xi1>
    %136 = arith.select %135, %129, %94 : vector<4x128xi1>, vector<4x128xf32>
    %c4 = arith.constant 4 : index
    %c0_43 = arith.constant 0 : index
    %c0_44 = arith.constant 0 : index
    %137 = vector.load %arg1[%c4, %c0_43, %c0_44] : memref<8x4x128xf32, #tpu.memory_space<vmem>>, vector<1x4x128xf32>
    %138 = vector.shape_cast %137 : vector<1x4x128xf32> to vector<4x128xf32>
    %139 = vector.extract_strided_slice %136 {offsets = [0, 0], sizes = [1, 128], strides = [1, 1]} : vector<4x128xf32> to vector<1x128xf32>
    %140 = vector.broadcast %139 : vector<1x128xf32> to vector<4x128xf32>
    %141 = vector.broadcast %1 : vector<4x1xf32> to vector<4x128xf32>
    %142 = arith.addf %140, %141 : vector<4x128xf32>
    %c0_i32_45 = arith.constant 0 : i32
    %143 = vector.broadcast %c0_i32_45 : i32 to vector<4x128xi32>
    %144 = vector.extract_strided_slice %136 {offsets = [1, 0], sizes = [1, 128], strides = [1, 1]} : vector<4x128xf32> to vector<1x128xf32>
    %145 = vector.broadcast %144 : vector<1x128xf32> to vector<4x128xf32>
    %146 = vector.broadcast %2 : vector<4x1xf32> to vector<4x128xf32>
    %147 = arith.addf %145, %146 : vector<4x128xf32>
    %148 = arith.cmpf ogt, %147, %142 : vector<4x128xf32>
    %149 = arith.select %148, %147, %142 : vector<4x128xi1>, vector<4x128xf32>
    %c1_i32_46 = arith.constant 1 : i32
    %150 = vector.broadcast %c1_i32_46 : i32 to vector<4x128xi32>
    %151 = arith.select %148, %150, %143 : vector<4x128xi1>, vector<4x128xi32>
    %152 = vector.extract_strided_slice %136 {offsets = [2, 0], sizes = [1, 128], strides = [1, 1]} : vector<4x128xf32> to vector<1x128xf32>
    %153 = vector.broadcast %152 : vector<1x128xf32> to vector<4x128xf32>
    %154 = vector.broadcast %3 : vector<4x1xf32> to vector<4x128xf32>
    %155 = arith.addf %153, %154 : vector<4x128xf32>
    %156 = arith.cmpf ogt, %155, %149 : vector<4x128xf32>
    %157 = arith.select %156, %155, %149 : vector<4x128xi1>, vector<4x128xf32>
    %c2_i32_47 = arith.constant 2 : i32
    %158 = vector.broadcast %c2_i32_47 : i32 to vector<4x128xi32>
    %159 = arith.select %156, %158, %151 : vector<4x128xi1>, vector<4x128xi32>
    %160 = vector.extract_strided_slice %136 {offsets = [3, 0], sizes = [1, 128], strides = [1, 1]} : vector<4x128xf32> to vector<1x128xf32>
    %161 = vector.broadcast %160 : vector<1x128xf32> to vector<4x128xf32>
    %162 = vector.broadcast %4 : vector<4x1xf32> to vector<4x128xf32>
    %163 = arith.addf %161, %162 : vector<4x128xf32>
    %164 = arith.cmpf ogt, %163, %157 : vector<4x128xf32>
    %165 = arith.select %164, %163, %157 : vector<4x128xi1>, vector<4x128xf32>
    %c3_i32_48 = arith.constant 3 : i32
    %166 = vector.broadcast %c3_i32_48 : i32 to vector<4x128xi32>
    %167 = arith.select %164, %166, %159 : vector<4x128xi1>, vector<4x128xi32>
    %c4_49 = arith.constant 4 : index
    %c0_50 = arith.constant 0 : index
    %c0_51 = arith.constant 0 : index
    %168 = vector.load %arg8[%c4_49, %c0_50, %c0_51] : memref<8x4x128xi32, #tpu.memory_space<vmem>>, vector<1x4x128xi32>
    %169 = vector.shape_cast %168 : vector<1x4x128xi32> to vector<4x128xi32>
    %170 = vector.shape_cast %167 : vector<4x128xi32> to vector<1x4x128xi32>
    tpu.vector_store %arg8[%c4_49, %c0_50, %c0_51], %170 {strides = array<i32>} : memref<8x4x128xi32, #tpu.memory_space<vmem>>, vector<1x4x128xi32>,
    %171 = arith.addf %165, %138 : vector<4x128xf32>
    %c4_52 = arith.constant 4 : index
    %c0_53 = arith.constant 0 : index
    %c0_54 = arith.constant 0 : index
    %172 = vector.load %arg2[%c4_52, %c0_53, %c0_54] : memref<8x1x128xi32, #tpu.memory_space<vmem>>, vector<1x1x128xi32>
    %173 = vector.shape_cast %172 : vector<1x1x128xi32> to vector<1x128xi32>
    %c0_i32_55 = arith.constant 0 : i32
    %174 = vector.broadcast %c0_i32_55 : i32 to vector<1x128xi32>
    %175 = arith.cmpi sgt, %173, %174 : vector<1x128xi32>
    %176 = vector.shape_cast %175 : vector<1x128xi1> to vector<1x128xi1>
    %177 = vector.broadcast %176 : vector<1x128xi1> to vector<4x128xi1>
    %178 = arith.select %177, %171, %136 : vector<4x128xi1>, vector<4x128xf32>
    %c5 = arith.constant 5 : index
    %c0_56 = arith.constant 0 : index
    %c0_57 = arith.constant 0 : index
    %179 = vector.load %arg1[%c5, %c0_56, %c0_57] : memref<8x4x128xf32, #tpu.memory_space<vmem>>, vector<1x4x128xf32>
    %180 = vector.shape_cast %179 : vector<1x4x128xf32> to vector<4x128xf32>
    %181 = vector.extract_strided_slice %178 {offsets = [0, 0], sizes = [1, 128], strides = [1, 1]} : vector<4x128xf32> to vector<1x128xf32>
    %182 = vector.broadcast %181 : vector<1x128xf32> to vector<4x128xf32>
    %183 = vector.broadcast %1 : vector<4x1xf32> to vector<4x128xf32>
    %184 = arith.addf %182, %183 : vector<4x128xf32>
    %c0_i32_58 = arith.constant 0 : i32
    %185 = vector.broadcast %c0_i32_58 : i32 to vector<4x128xi32>
    %186 = vector.extract_strided_slice %178 {offsets = [1, 0], sizes = [1, 128], strides = [1, 1]} : vector<4x128xf32> to vector<1x128xf32>
    %187 = vector.broadcast %186 : vector<1x128xf32> to vector<4x128xf32>
    %188 = vector.broadcast %2 : vector<4x1xf32> to vector<4x128xf32>
    %189 = arith.addf %187, %188 : vector<4x128xf32>
    %190 = arith.cmpf ogt, %189, %184 : vector<4x128xf32>
    %191 = arith.select %190, %189, %184 : vector<4x128xi1>, vector<4x128xf32>
    %c1_i32_59 = arith.constant 1 : i32
    %192 = vector.broadcast %c1_i32_59 : i32 to vector<4x128xi32>
    %193 = arith.select %190, %192, %185 : vector<4x128xi1>, vector<4x128xi32>
    %194 = vector.extract_strided_slice %178 {offsets = [2, 0], sizes = [1, 128], strides = [1, 1]} : vector<4x128xf32> to vector<1x128xf32>
    %195 = vector.broadcast %194 : vector<1x128xf32> to vector<4x128xf32>
    %196 = vector.broadcast %3 : vector<4x1xf32> to vector<4x128xf32>
    %197 = arith.addf %195, %196 : vector<4x128xf32>
    %198 = arith.cmpf ogt, %197, %191 : vector<4x128xf32>
    %199 = arith.select %198, %197, %191 : vector<4x128xi1>, vector<4x128xf32>
    %c2_i32_60 = arith.constant 2 : i32
    %200 = vector.broadcast %c2_i32_60 : i32 to vector<4x128xi32>
    %201 = arith.select %198, %200, %193 : vector<4x128xi1>, vector<4x128xi32>
    %202 = vector.extract_strided_slice %178 {offsets = [3, 0], sizes = [1, 128], strides = [1, 1]} : vector<4x128xf32> to vector<1x128xf32>
    %203 = vector.broadcast %202 : vector<1x128xf32> to vector<4x128xf32>
    %204 = vector.broadcast %4 : vector<4x1xf32> to vector<4x128xf32>
    %205 = arith.addf %203, %204 : vector<4x128xf32>
    %206 = arith.cmpf ogt, %205, %199 : vector<4x128xf32>
    %207 = arith.select %206, %205, %199 : vector<4x128xi1>, vector<4x128xf32>
    %c3_i32_61 = arith.constant 3 : i32
    %208 = vector.broadcast %c3_i32_61 : i32 to vector<4x128xi32>
    %209 = arith.select %206, %208, %201 : vector<4x128xi1>, vector<4x128xi32>
    %c5_62 = arith.constant 5 : index
    %c0_63 = arith.constant 0 : index
    %c0_64 = arith.constant 0 : index
    %210 = vector.load %arg8[%c5_62, %c0_63, %c0_64] : memref<8x4x128xi32, #tpu.memory_space<vmem>>, vector<1x4x128xi32>
    %211 = vector.shape_cast %210 : vector<1x4x128xi32> to vector<4x128xi32>
    %212 = vector.shape_cast %209 : vector<4x128xi32> to vector<1x4x128xi32>
    tpu.vector_store %arg8[%c5_62, %c0_63, %c0_64], %212 {strides = array<i32>} : memref<8x4x128xi32, #tpu.memory_space<vmem>>, vector<1x4x128xi32>,
    %213 = arith.addf %207, %180 : vector<4x128xf32>
    %c5_65 = arith.constant 5 : index
    %c0_66 = arith.constant 0 : index
    %c0_67 = arith.constant 0 : index
    %214 = vector.load %arg2[%c5_65, %c0_66, %c0_67] : memref<8x1x128xi32, #tpu.memory_space<vmem>>, vector<1x1x128xi32>
    %215 = vector.shape_cast %214 : vector<1x1x128xi32> to vector<1x128xi32>
    %c0_i32_68 = arith.constant 0 : i32
    %216 = vector.broadcast %c0_i32_68 : i32 to vector<1x128xi32>
    %217 = arith.cmpi sgt, %215, %216 : vector<1x128xi32>
    %218 = vector.shape_cast %217 : vector<1x128xi1> to vector<1x128xi1>
    %219 = vector.broadcast %218 : vector<1x128xi1> to vector<4x128xi1>
    %220 = arith.select %219, %213, %178 : vector<4x128xi1>, vector<4x128xf32>
    %c6 = arith.constant 6 : index
    %c0_69 = arith.constant 0 : index
    %c0_70 = arith.constant 0 : index
    %221 = vector.load %arg1[%c6, %c0_69, %c0_70] : memref<8x4x128xf32, #tpu.memory_space<vmem>>, vector<1x4x128xf32>
    %222 = vector.shape_cast %221 : vector<1x4x128xf32> to vector<4x128xf32>
    %223 = vector.extract_strided_slice %220 {offsets = [0, 0], sizes = [1, 128], strides = [1, 1]} : vector<4x128xf32> to vector<1x128xf32>
    %224 = vector.broadcast %223 : vector<1x128xf32> to vector<4x128xf32>
    %225 = vector.broadcast %1 : vector<4x1xf32> to vector<4x128xf32>
    %226 = arith.addf %224, %225 : vector<4x128xf32>
    %c0_i32_71 = arith.constant 0 : i32
    %227 = vector.broadcast %c0_i32_71 : i32 to vector<4x128xi32>
    %228 = vector.extract_strided_slice %220 {offsets = [1, 0], sizes = [1, 128], strides = [1, 1]} : vector<4x128xf32> to vector<1x128xf32>
    %229 = vector.broadcast %228 : vector<1x128xf32> to vector<4x128xf32>
    %230 = vector.broadcast %2 : vector<4x1xf32> to vector<4x128xf32>
    %231 = arith.addf %229, %230 : vector<4x128xf32>
    %232 = arith.cmpf ogt, %231, %226 : vector<4x128xf32>
    %233 = arith.select %232, %231, %226 : vector<4x128xi1>, vector<4x128xf32>
    %c1_i32_72 = arith.constant 1 : i32
    %234 = vector.broadcast %c1_i32_72 : i32 to vector<4x128xi32>
    %235 = arith.select %232, %234, %227 : vector<4x128xi1>, vector<4x128xi32>
    %236 = vector.extract_strided_slice %220 {offsets = [2, 0], sizes = [1, 128], strides = [1, 1]} : vector<4x128xf32> to vector<1x128xf32>
    %237 = vector.broadcast %236 : vector<1x128xf32> to vector<4x128xf32>
    %238 = vector.broadcast %3 : vector<4x1xf32> to vector<4x128xf32>
    %239 = arith.addf %237, %238 : vector<4x128xf32>
    %240 = arith.cmpf ogt, %239, %233 : vector<4x128xf32>
    %241 = arith.select %240, %239, %233 : vector<4x128xi1>, vector<4x128xf32>
    %c2_i32_73 = arith.constant 2 : i32
    %242 = vector.broadcast %c2_i32_73 : i32 to vector<4x128xi32>
    %243 = arith.select %240, %242, %235 : vector<4x128xi1>, vector<4x128xi32>
    %244 = vector.extract_strided_slice %220 {offsets = [3, 0], sizes = [1, 128], strides = [1, 1]} : vector<4x128xf32> to vector<1x128xf32>
    %245 = vector.broadcast %244 : vector<1x128xf32> to vector<4x128xf32>
    %246 = vector.broadcast %4 : vector<4x1xf32> to vector<4x128xf32>
    %247 = arith.addf %245, %246 : vector<4x128xf32>
    %248 = arith.cmpf ogt, %247, %241 : vector<4x128xf32>
    %249 = arith.select %248, %247, %241 : vector<4x128xi1>, vector<4x128xf32>
    %c3_i32_74 = arith.constant 3 : i32
    %250 = vector.broadcast %c3_i32_74 : i32 to vector<4x128xi32>
    %251 = arith.select %248, %250, %243 : vector<4x128xi1>, vector<4x128xi32>
    %c6_75 = arith.constant 6 : index
    %c0_76 = arith.constant 0 : index
    %c0_77 = arith.constant 0 : index
    %252 = vector.load %arg8[%c6_75, %c0_76, %c0_77] : memref<8x4x128xi32, #tpu.memory_space<vmem>>, vector<1x4x128xi32>
    %253 = vector.shape_cast %252 : vector<1x4x128xi32> to vector<4x128xi32>
    %254 = vector.shape_cast %251 : vector<4x128xi32> to vector<1x4x128xi32>
    tpu.vector_store %arg8[%c6_75, %c0_76, %c0_77], %254 {strides = array<i32>} : memref<8x4x128xi32, #tpu.memory_space<vmem>>, vector<1x4x128xi32>,
    %255 = arith.addf %249, %222 : vector<4x128xf32>
    %c6_78 = arith.constant 6 : index
    %c0_79 = arith.constant 0 : index
    %c0_80 = arith.constant 0 : index
    %256 = vector.load %arg2[%c6_78, %c0_79, %c0_80] : memref<8x1x128xi32, #tpu.memory_space<vmem>>, vector<1x1x128xi32>
    %257 = vector.shape_cast %256 : vector<1x1x128xi32> to vector<1x128xi32>
    %c0_i32_81 = arith.constant 0 : i32
    %258 = vector.broadcast %c0_i32_81 : i32 to vector<1x128xi32>
    %259 = arith.cmpi sgt, %257, %258 : vector<1x128xi32>
    %260 = vector.shape_cast %259 : vector<1x128xi1> to vector<1x128xi1>
    %261 = vector.broadcast %260 : vector<1x128xi1> to vector<4x128xi1>
    %262 = arith.select %261, %255, %220 : vector<4x128xi1>, vector<4x128xf32>
    %c7 = arith.constant 7 : index
    %c0_82 = arith.constant 0 : index
    %c0_83 = arith.constant 0 : index
    %263 = vector.load %arg1[%c7, %c0_82, %c0_83] : memref<8x4x128xf32, #tpu.memory_space<vmem>>, vector<1x4x128xf32>
    %264 = vector.shape_cast %263 : vector<1x4x128xf32> to vector<4x128xf32>
    %265 = vector.extract_strided_slice %262 {offsets = [0, 0], sizes = [1, 128], strides = [1, 1]} : vector<4x128xf32> to vector<1x128xf32>
    %266 = vector.broadcast %265 : vector<1x128xf32> to vector<4x128xf32>
    %267 = vector.broadcast %1 : vector<4x1xf32> to vector<4x128xf32>
    %268 = arith.addf %266, %267 : vector<4x128xf32>
    %c0_i32_84 = arith.constant 0 : i32
    %269 = vector.broadcast %c0_i32_84 : i32 to vector<4x128xi32>
    %270 = vector.extract_strided_slice %262 {offsets = [1, 0], sizes = [1, 128], strides = [1, 1]} : vector<4x128xf32> to vector<1x128xf32>
    %271 = vector.broadcast %270 : vector<1x128xf32> to vector<4x128xf32>
    %272 = vector.broadcast %2 : vector<4x1xf32> to vector<4x128xf32>
    %273 = arith.addf %271, %272 : vector<4x128xf32>
    %274 = arith.cmpf ogt, %273, %268 : vector<4x128xf32>
    %275 = arith.select %274, %273, %268 : vector<4x128xi1>, vector<4x128xf32>
    %c1_i32_85 = arith.constant 1 : i32
    %276 = vector.broadcast %c1_i32_85 : i32 to vector<4x128xi32>
    %277 = arith.select %274, %276, %269 : vector<4x128xi1>, vector<4x128xi32>
    %278 = vector.extract_strided_slice %262 {offsets = [2, 0], sizes = [1, 128], strides = [1, 1]} : vector<4x128xf32> to vector<1x128xf32>
    %279 = vector.broadcast %278 : vector<1x128xf32> to vector<4x128xf32>
    %280 = vector.broadcast %3 : vector<4x1xf32> to vector<4x128xf32>
    %281 = arith.addf %279, %280 : vector<4x128xf32>
    %282 = arith.cmpf ogt, %281, %275 : vector<4x128xf32>
    %283 = arith.select %282, %281, %275 : vector<4x128xi1>, vector<4x128xf32>
    %c2_i32_86 = arith.constant 2 : i32
    %284 = vector.broadcast %c2_i32_86 : i32 to vector<4x128xi32>
    %285 = arith.select %282, %284, %277 : vector<4x128xi1>, vector<4x128xi32>
    %286 = vector.extract_strided_slice %262 {offsets = [3, 0], sizes = [1, 128], strides = [1, 1]} : vector<4x128xf32> to vector<1x128xf32>
    %287 = vector.broadcast %286 : vector<1x128xf32> to vector<4x128xf32>
    %288 = vector.broadcast %4 : vector<4x1xf32> to vector<4x128xf32>
    %289 = arith.addf %287, %288 : vector<4x128xf32>
    %290 = arith.cmpf ogt, %289, %283 : vector<4x128xf32>
    %291 = arith.select %290, %289, %283 : vector<4x128xi1>, vector<4x128xf32>
    %c3_i32_87 = arith.constant 3 : i32
    %292 = vector.broadcast %c3_i32_87 : i32 to vector<4x128xi32>
    %293 = arith.select %290, %292, %285 : vector<4x128xi1>, vector<4x128xi32>
    %c7_88 = arith.constant 7 : index
    %c0_89 = arith.constant 0 : index
    %c0_90 = arith.constant 0 : index
    %294 = vector.load %arg8[%c7_88, %c0_89, %c0_90] : memref<8x4x128xi32, #tpu.memory_space<vmem>>, vector<1x4x128xi32>
    %295 = vector.shape_cast %294 : vector<1x4x128xi32> to vector<4x128xi32>
    %296 = vector.shape_cast %293 : vector<4x128xi32> to vector<1x4x128xi32>
    tpu.vector_store %arg8[%c7_88, %c0_89, %c0_90], %296 {strides = array<i32>} : memref<8x4x128xi32, #tpu.memory_space<vmem>>, vector<1x4x128xi32>,
    %297 = arith.addf %291, %264 : vector<4x128xf32>
    %c7_91 = arith.constant 7 : index
    %c0_92 = arith.constant 0 : index
    %c0_93 = arith.constant 0 : index
    %298 = vector.load %arg2[%c7_91, %c0_92, %c0_93] : memref<8x1x128xi32, #tpu.memory_space<vmem>>, vector<1x1x128xi32>
    %299 = vector.shape_cast %298 : vector<1x1x128xi32> to vector<1x128xi32>
    %c0_i32_94 = arith.constant 0 : i32
    %300 = vector.broadcast %c0_i32_94 : i32 to vector<1x128xi32>
    %301 = arith.cmpi sgt, %299, %300 : vector<1x128xi32>
    %302 = vector.shape_cast %301 : vector<1x128xi1> to vector<1x128xi1>
    %303 = vector.broadcast %302 : vector<1x128xi1> to vector<4x128xi1>
    %304 = arith.select %303, %297, %262 : vector<4x128xi1>, vector<4x128xf32>
    %c0_95 = arith.constant 0 : index
    %c0_96 = arith.constant 0 : index
    %305 = vector.load %arg5[%c0_95, %c0_96] : memref<4x1xf32, #tpu.memory_space<vmem>>, vector<4x1xf32>
    %306 = vector.broadcast %305 : vector<4x1xf32> to vector<4x128xf32>
    %307 = arith.addf %304, %306 : vector<4x128xf32>
    %308 = vector.extract_strided_slice %307 {offsets = [0, 0], sizes = [1, 128], strides = [1, 1]} : vector<4x128xf32> to vector<1x128xf32>
    %c0_i32_97 = arith.constant 0 : i32
    %309 = vector.broadcast %c0_i32_97 : i32 to vector<1x128xi32>
    %310 = vector.extract_strided_slice %307 {offsets = [1, 0], sizes = [1, 128], strides = [1, 1]} : vector<4x128xf32> to vector<1x128xf32>
    %311 = arith.cmpf ogt, %310, %308 : vector<1x128xf32>
    %312 = arith.select %311, %310, %308 : vector<1x128xi1>, vector<1x128xf32>
    %c1_i32_98 = arith.constant 1 : i32
    %313 = vector.broadcast %c1_i32_98 : i32 to vector<1x128xi32>
    %314 = arith.select %311, %313, %309 : vector<1x128xi1>, vector<1x128xi32>
    %315 = vector.extract_strided_slice %307 {offsets = [2, 0], sizes = [1, 128], strides = [1, 1]} : vector<4x128xf32> to vector<1x128xf32>
    %316 = arith.cmpf ogt, %315, %312 : vector<1x128xf32>
    %317 = arith.select %316, %315, %312 : vector<1x128xi1>, vector<1x128xf32>
    %c2_i32_99 = arith.constant 2 : i32
    %318 = vector.broadcast %c2_i32_99 : i32 to vector<1x128xi32>
    %319 = arith.select %316, %318, %314 : vector<1x128xi1>, vector<1x128xi32>
    %320 = vector.extract_strided_slice %307 {offsets = [3, 0], sizes = [1, 128], strides = [1, 1]} : vector<4x128xf32> to vector<1x128xf32>
    %321 = arith.cmpf ogt, %320, %317 : vector<1x128xf32>
    %c3_i32_100 = arith.constant 3 : i32
    %322 = vector.broadcast %c3_i32_100 : i32 to vector<1x128xi32>
    %323 = arith.select %321, %322, %319 : vector<1x128xi1>, vector<1x128xi32>
    %c7_i32 = arith.constant 7 : i32
    %324 = vector.broadcast %c7_i32 : i32 to vector<1x128xi32>
    %325 = arith.cmpi eq, %5, %324 : vector<1x128xi32>
    %326 = arith.select %325, %323, %323 : vector<1x128xi1>, vector<1x128xi32>
    %c7_i32_101 = arith.constant 7 : i32
    %327 = vector.broadcast %c7_i32_101 : i32 to vector<1x128xi32>
    %328 = arith.cmpi sge, %5, %327 : vector<1x128xi32>
    %c0_i32_102 = arith.constant 0 : i32
    %329 = vector.broadcast %c0_i32_102 : i32 to vector<1x128xi32>
    %330 = arith.select %328, %326, %329 : vector<1x128xi1>, vector<1x128xi32>
    %c7_103 = arith.constant 7 : index
    %c0_104 = arith.constant 0 : index
    %331 = vector.load %arg7[%c7_103, %c0_104] : memref<8x128xi32, #tpu.memory_space<vmem>>, vector<1x128xi32>
    tpu.vector_store %arg7[%c7_103, %c0_104], %330 {strides = array<i32>} : memref<8x128xi32, #tpu.memory_space<vmem>>, vector<1x128xi32>,
    %c7_105 = arith.constant 7 : index
    %c0_106 = arith.constant 0 : index
    %c0_107 = arith.constant 0 : index
    %332 = vector.load %arg8[%c7_105, %c0_106, %c0_107] : memref<8x4x128xi32, #tpu.memory_space<vmem>>, vector<1x4x128xi32>
    %333 = vector.shape_cast %332 : vector<1x4x128xi32> to vector<4x128xi32>
    %334 = vector.extract_strided_slice %333 {offsets = [0, 0], sizes = [1, 128], strides = [1, 1]} : vector<4x128xi32> to vector<1x128xi32>
    %c1_i32_108 = arith.constant 1 : i32
    %335 = vector.broadcast %c1_i32_108 : i32 to vector<1x128xi32>
    %336 = arith.cmpi eq, %326, %335 : vector<1x128xi32>
    %337 = vector.extract_strided_slice %333 {offsets = [1, 0], sizes = [1, 128], strides = [1, 1]} : vector<4x128xi32> to vector<1x128xi32>
    %338 = arith.select %336, %337, %334 : vector<1x128xi1>, vector<1x128xi32>
    %c2_i32_109 = arith.constant 2 : i32
    %339 = vector.broadcast %c2_i32_109 : i32 to vector<1x128xi32>
    %340 = arith.cmpi eq, %326, %339 : vector<1x128xi32>
    %341 = vector.extract_strided_slice %333 {offsets = [2, 0], sizes = [1, 128], strides = [1, 1]} : vector<4x128xi32> to vector<1x128xi32>
    %342 = arith.select %340, %341, %338 : vector<1x128xi1>, vector<1x128xi32>
    %c3_i32_110 = arith.constant 3 : i32
    %343 = vector.broadcast %c3_i32_110 : i32 to vector<1x128xi32>
    %344 = arith.cmpi eq, %326, %343 : vector<1x128xi32>
    %345 = vector.extract_strided_slice %333 {offsets = [3, 0], sizes = [1, 128], strides = [1, 1]} : vector<4x128xi32> to vector<1x128xi32>
    %346 = arith.select %344, %345, %342 : vector<1x128xi1>, vector<1x128xi32>
    %347 = arith.select %328, %346, %326 : vector<1x128xi1>, vector<1x128xi32>
    %c6_i32 = arith.constant 6 : i32
    %348 = vector.broadcast %c6_i32 : i32 to vector<1x128xi32>
    %349 = arith.cmpi eq, %5, %348 : vector<1x128xi32>
    %350 = arith.select %349, %323, %347 : vector<1x128xi1>, vector<1x128xi32>
    %c6_i32_111 = arith.constant 6 : i32
    %351 = vector.broadcast %c6_i32_111 : i32 to vector<1x128xi32>
    %352 = arith.cmpi sge, %5, %351 : vector<1x128xi32>
    %c0_i32_112 = arith.constant 0 : i32
    %353 = vector.broadcast %c0_i32_112 : i32 to vector<1x128xi32>
    %354 = arith.select %352, %350, %353 : vector<1x128xi1>, vector<1x128xi32>
    %c6_113 = arith.constant 6 : index
    %c0_114 = arith.constant 0 : index
    %355 = vector.load %arg7[%c6_113, %c0_114] : memref<8x128xi32, #tpu.memory_space<vmem>>, vector<1x128xi32>
    tpu.vector_store %arg7[%c6_113, %c0_114], %354 {strides = array<i32>} : memref<8x128xi32, #tpu.memory_space<vmem>>, vector<1x128xi32>,
    %c6_115 = arith.constant 6 : index
    %c0_116 = arith.constant 0 : index
    %c0_117 = arith.constant 0 : index
    %356 = vector.load %arg8[%c6_115, %c0_116, %c0_117] : memref<8x4x128xi32, #tpu.memory_space<vmem>>, vector<1x4x128xi32>
    %357 = vector.shape_cast %356 : vector<1x4x128xi32> to vector<4x128xi32>
    %358 = vector.extract_strided_slice %357 {offsets = [0, 0], sizes = [1, 128], strides = [1, 1]} : vector<4x128xi32> to vector<1x128xi32>
    %c1_i32_118 = arith.constant 1 : i32
    %359 = vector.broadcast %c1_i32_118 : i32 to vector<1x128xi32>
    %360 = arith.cmpi eq, %350, %359 : vector<1x128xi32>
    %361 = vector.extract_strided_slice %357 {offsets = [1, 0], sizes = [1, 128], strides = [1, 1]} : vector<4x128xi32> to vector<1x128xi32>
    %362 = arith.select %360, %361, %358 : vector<1x128xi1>, vector<1x128xi32>
    %c2_i32_119 = arith.constant 2 : i32
    %363 = vector.broadcast %c2_i32_119 : i32 to vector<1x128xi32>
    %364 = arith.cmpi eq, %350, %363 : vector<1x128xi32>
    %365 = vector.extract_strided_slice %357 {offsets = [2, 0], sizes = [1, 128], strides = [1, 1]} : vector<4x128xi32> to vector<1x128xi32>
    %366 = arith.select %364, %365, %362 : vector<1x128xi1>, vector<1x128xi32>
    %c3_i32_120 = arith.constant 3 : i32
    %367 = vector.broadcast %c3_i32_120 : i32 to vector<1x128xi32>
    %368 = arith.cmpi eq, %350, %367 : vector<1x128xi32>
    %369 = vector.extract_strided_slice %357 {offsets = [3, 0], sizes = [1, 128], strides = [1, 1]} : vector<4x128xi32> to vector<1x128xi32>
    %370 = arith.select %368, %369, %366 : vector<1x128xi1>, vector<1x128xi32>
    %371 = arith.select %352, %370, %350 : vector<1x128xi1>, vector<1x128xi32>
    %c5_i32 = arith.constant 5 : i32
    %372 = vector.broadcast %c5_i32 : i32 to vector<1x128xi32>
    %373 = arith.cmpi eq, %5, %372 : vector<1x128xi32>
    %374 = arith.select %373, %323, %371 : vector<1x128xi1>, vector<1x128xi32>
    %c5_i32_121 = arith.constant 5 : i32
    %375 = vector.broadcast %c5_i32_121 : i32 to vector<1x128xi32>
    %376 = arith.cmpi sge, %5, %375 : vector<1x128xi32>
    %c0_i32_122 = arith.constant 0 : i32
    %377 = vector.broadcast %c0_i32_122 : i32 to vector<1x128xi32>
    %378 = arith.select %376, %374, %377 : vector<1x128xi1>, vector<1x128xi32>
    %c5_123 = arith.constant 5 : index
    %c0_124 = arith.constant 0 : index
    %379 = vector.load %arg7[%c5_123, %c0_124] : memref<8x128xi32, #tpu.memory_space<vmem>>, vector<1x128xi32>
    tpu.vector_store %arg7[%c5_123, %c0_124], %378 {strides = array<i32>} : memref<8x128xi32, #tpu.memory_space<vmem>>, vector<1x128xi32>,
    %c5_125 = arith.constant 5 : index
    %c0_126 = arith.constant 0 : index
    %c0_127 = arith.constant 0 : index
    %380 = vector.load %arg8[%c5_125, %c0_126, %c0_127] : memref<8x4x128xi32, #tpu.memory_space<vmem>>, vector<1x4x128xi32>
    %381 = vector.shape_cast %380 : vector<1x4x128xi32> to vector<4x128xi32>
    %382 = vector.extract_strided_slice %381 {offsets = [0, 0], sizes = [1, 128], strides = [1, 1]} : vector<4x128xi32> to vector<1x128xi32>
    %c1_i32_128 = arith.constant 1 : i32
    %383 = vector.broadcast %c1_i32_128 : i32 to vector<1x128xi32>
    %384 = arith.cmpi eq, %374, %383 : vector<1x128xi32>
    %385 = vector.extract_strided_slice %381 {offsets = [1, 0], sizes = [1, 128], strides = [1, 1]} : vector<4x128xi32> to vector<1x128xi32>
    %386 = arith.select %384, %385, %382 : vector<1x128xi1>, vector<1x128xi32>
    %c2_i32_129 = arith.constant 2 : i32
    %387 = vector.broadcast %c2_i32_129 : i32 to vector<1x128xi32>
    %388 = arith.cmpi eq, %374, %387 : vector<1x128xi32>
    %389 = vector.extract_strided_slice %381 {offsets = [2, 0], sizes = [1, 128], strides = [1, 1]} : vector<4x128xi32> to vector<1x128xi32>
    %390 = arith.select %388, %389, %386 : vector<1x128xi1>, vector<1x128xi32>
    %c3_i32_130 = arith.constant 3 : i32
    %391 = vector.broadcast %c3_i32_130 : i32 to vector<1x128xi32>
    %392 = arith.cmpi eq, %374, %391 : vector<1x128xi32>
    %393 = vector.extract_strided_slice %381 {offsets = [3, 0], sizes = [1, 128], strides = [1, 1]} : vector<4x128xi32> to vector<1x128xi32>
    %394 = arith.select %392, %393, %390 : vector<1x128xi1>, vector<1x128xi32>
    %395 = arith.select %376, %394, %374 : vector<1x128xi1>, vector<1x128xi32>
    %c4_i32 = arith.constant 4 : i32
    %396 = vector.broadcast %c4_i32 : i32 to vector<1x128xi32>
    %397 = arith.cmpi eq, %5, %396 : vector<1x128xi32>
    %398 = arith.select %397, %323, %395 : vector<1x128xi1>, vector<1x128xi32>
    %c4_i32_131 = arith.constant 4 : i32
    %399 = vector.broadcast %c4_i32_131 : i32 to vector<1x128xi32>
    %400 = arith.cmpi sge, %5, %399 : vector<1x128xi32>
    %c0_i32_132 = arith.constant 0 : i32
    %401 = vector.broadcast %c0_i32_132 : i32 to vector<1x128xi32>
    %402 = arith.select %400, %398, %401 : vector<1x128xi1>, vector<1x128xi32>
    %c4_133 = arith.constant 4 : index
    %c0_134 = arith.constant 0 : index
    %403 = vector.load %arg7[%c4_133, %c0_134] : memref<8x128xi32, #tpu.memory_space<vmem>>, vector<1x128xi32>
    tpu.vector_store %arg7[%c4_133, %c0_134], %402 {strides = array<i32>} : memref<8x128xi32, #tpu.memory_space<vmem>>, vector<1x128xi32>,
    %c4_135 = arith.constant 4 : index
    %c0_136 = arith.constant 0 : index
    %c0_137 = arith.constant 0 : index
    %404 = vector.load %arg8[%c4_135, %c0_136, %c0_137] : memref<8x4x128xi32, #tpu.memory_space<vmem>>, vector<1x4x128xi32>
    %405 = vector.shape_cast %404 : vector<1x4x128xi32> to vector<4x128xi32>
    %406 = vector.extract_strided_slice %405 {offsets = [0, 0], sizes = [1, 128], strides = [1, 1]} : vector<4x128xi32> to vector<1x128xi32>
    %c1_i32_138 = arith.constant 1 : i32
    %407 = vector.broadcast %c1_i32_138 : i32 to vector<1x128xi32>
    %408 = arith.cmpi eq, %398, %407 : vector<1x128xi32>
    %409 = vector.extract_strided_slice %405 {offsets = [1, 0], sizes = [1, 128], strides = [1, 1]} : vector<4x128xi32> to vector<1x128xi32>
    %410 = arith.select %408, %409, %406 : vector<1x128xi1>, vector<1x128xi32>
    %c2_i32_139 = arith.constant 2 : i32
    %411 = vector.broadcast %c2_i32_139 : i32 to vector<1x128xi32>
    %412 = arith.cmpi eq, %398, %411 : vector<1x128xi32>
    %413 = vector.extract_strided_slice %405 {offsets = [2, 0], sizes = [1, 128], strides = [1, 1]} : vector<4x128xi32> to vector<1x128xi32>
    %414 = arith.select %412, %413, %410 : vector<1x128xi1>, vector<1x128xi32>
    %c3_i32_140 = arith.constant 3 : i32
    %415 = vector.broadcast %c3_i32_140 : i32 to vector<1x128xi32>
    %416 = arith.cmpi eq, %398, %415 : vector<1x128xi32>
    %417 = vector.extract_strided_slice %405 {offsets = [3, 0], sizes = [1, 128], strides = [1, 1]} : vector<4x128xi32> to vector<1x128xi32>
    %418 = arith.select %416, %417, %414 : vector<1x128xi1>, vector<1x128xi32>
    %419 = arith.select %400, %418, %398 : vector<1x128xi1>, vector<1x128xi32>
    %c3_i32_141 = arith.constant 3 : i32
    %420 = vector.broadcast %c3_i32_141 : i32 to vector<1x128xi32>
    %421 = arith.cmpi eq, %5, %420 : vector<1x128xi32>
    %422 = arith.select %421, %323, %419 : vector<1x128xi1>, vector<1x128xi32>
    %c3_i32_142 = arith.constant 3 : i32
    %423 = vector.broadcast %c3_i32_142 : i32 to vector<1x128xi32>
    %424 = arith.cmpi sge, %5, %423 : vector<1x128xi32>
    %c0_i32_143 = arith.constant 0 : i32
    %425 = vector.broadcast %c0_i32_143 : i32 to vector<1x128xi32>
    %426 = arith.select %424, %422, %425 : vector<1x128xi1>, vector<1x128xi32>
    %c3_144 = arith.constant 3 : index
    %c0_145 = arith.constant 0 : index
    %427 = vector.load %arg7[%c3_144, %c0_145] : memref<8x128xi32, #tpu.memory_space<vmem>>, vector<1x128xi32>
    tpu.vector_store %arg7[%c3_144, %c0_145], %426 {strides = array<i32>} : memref<8x128xi32, #tpu.memory_space<vmem>>, vector<1x128xi32>,
    %c3_146 = arith.constant 3 : index
    %c0_147 = arith.constant 0 : index
    %c0_148 = arith.constant 0 : index
    %428 = vector.load %arg8[%c3_146, %c0_147, %c0_148] : memref<8x4x128xi32, #tpu.memory_space<vmem>>, vector<1x4x128xi32>
    %429 = vector.shape_cast %428 : vector<1x4x128xi32> to vector<4x128xi32>
    %430 = vector.extract_strided_slice %429 {offsets = [0, 0], sizes = [1, 128], strides = [1, 1]} : vector<4x128xi32> to vector<1x128xi32>
    %c1_i32_149 = arith.constant 1 : i32
    %431 = vector.broadcast %c1_i32_149 : i32 to vector<1x128xi32>
    %432 = arith.cmpi eq, %422, %431 : vector<1x128xi32>
    %433 = vector.extract_strided_slice %429 {offsets = [1, 0], sizes = [1, 128], strides = [1, 1]} : vector<4x128xi32> to vector<1x128xi32>
    %434 = arith.select %432, %433, %430 : vector<1x128xi1>, vector<1x128xi32>
    %c2_i32_150 = arith.constant 2 : i32
    %435 = vector.broadcast %c2_i32_150 : i32 to vector<1x128xi32>
    %436 = arith.cmpi eq, %422, %435 : vector<1x128xi32>
    %437 = vector.extract_strided_slice %429 {offsets = [2, 0], sizes = [1, 128], strides = [1, 1]} : vector<4x128xi32> to vector<1x128xi32>
    %438 = arith.select %436, %437, %434 : vector<1x128xi1>, vector<1x128xi32>
    %c3_i32_151 = arith.constant 3 : i32
    %439 = vector.broadcast %c3_i32_151 : i32 to vector<1x128xi32>
    %440 = arith.cmpi eq, %422, %439 : vector<1x128xi32>
    %441 = vector.extract_strided_slice %429 {offsets = [3, 0], sizes = [1, 128], strides = [1, 1]} : vector<4x128xi32> to vector<1x128xi32>
    %442 = arith.select %440, %441, %438 : vector<1x128xi1>, vector<1x128xi32>
    %443 = arith.select %424, %442, %422 : vector<1x128xi1>, vector<1x128xi32>
    %c2_i32_152 = arith.constant 2 : i32
    %444 = vector.broadcast %c2_i32_152 : i32 to vector<1x128xi32>
    %445 = arith.cmpi eq, %5, %444 : vector<1x128xi32>
    %446 = arith.select %445, %323, %443 : vector<1x128xi1>, vector<1x128xi32>
    %c2_i32_153 = arith.constant 2 : i32
    %447 = vector.broadcast %c2_i32_153 : i32 to vector<1x128xi32>
    %448 = arith.cmpi sge, %5, %447 : vector<1x128xi32>
    %c0_i32_154 = arith.constant 0 : i32
    %449 = vector.broadcast %c0_i32_154 : i32 to vector<1x128xi32>
    %450 = arith.select %448, %446, %449 : vector<1x128xi1>, vector<1x128xi32>
    %c2_155 = arith.constant 2 : index
    %c0_156 = arith.constant 0 : index
    %451 = vector.load %arg7[%c2_155, %c0_156] : memref<8x128xi32, #tpu.memory_space<vmem>>, vector<1x128xi32>
    tpu.vector_store %arg7[%c2_155, %c0_156], %450 {strides = array<i32>} : memref<8x128xi32, #tpu.memory_space<vmem>>, vector<1x128xi32>,
    %c2_157 = arith.constant 2 : index
    %c0_158 = arith.constant 0 : index
    %c0_159 = arith.constant 0 : index
    %452 = vector.load %arg8[%c2_157, %c0_158, %c0_159] : memref<8x4x128xi32, #tpu.memory_space<vmem>>, vector<1x4x128xi32>
    %453 = vector.shape_cast %452 : vector<1x4x128xi32> to vector<4x128xi32>
    %454 = vector.extract_strided_slice %453 {offsets = [0, 0], sizes = [1, 128], strides = [1, 1]} : vector<4x128xi32> to vector<1x128xi32>
    %c1_i32_160 = arith.constant 1 : i32
    %455 = vector.broadcast %c1_i32_160 : i32 to vector<1x128xi32>
    %456 = arith.cmpi eq, %446, %455 : vector<1x128xi32>
    %457 = vector.extract_strided_slice %453 {offsets = [1, 0], sizes = [1, 128], strides = [1, 1]} : vector<4x128xi32> to vector<1x128xi32>
    %458 = arith.select %456, %457, %454 : vector<1x128xi1>, vector<1x128xi32>
    %c2_i32_161 = arith.constant 2 : i32
    %459 = vector.broadcast %c2_i32_161 : i32 to vector<1x128xi32>
    %460 = arith.cmpi eq, %446, %459 : vector<1x128xi32>
    %461 = vector.extract_strided_slice %453 {offsets = [2, 0], sizes = [1, 128], strides = [1, 1]} : vector<4x128xi32> to vector<1x128xi32>
    %462 = arith.select %460, %461, %458 : vector<1x128xi1>, vector<1x128xi32>
    %c3_i32_162 = arith.constant 3 : i32
    %463 = vector.broadcast %c3_i32_162 : i32 to vector<1x128xi32>
    %464 = arith.cmpi eq, %446, %463 : vector<1x128xi32>
    %465 = vector.extract_strided_slice %453 {offsets = [3, 0], sizes = [1, 128], strides = [1, 1]} : vector<4x128xi32> to vector<1x128xi32>
    %466 = arith.select %464, %465, %462 : vector<1x128xi1>, vector<1x128xi32>
    %467 = arith.select %448, %466, %446 : vector<1x128xi1>, vector<1x128xi32>
    %c1_i32_163 = arith.constant 1 : i32
    %468 = vector.broadcast %c1_i32_163 : i32 to vector<1x128xi32>
    %469 = arith.cmpi eq, %5, %468 : vector<1x128xi32>
    %470 = arith.select %469, %323, %467 : vector<1x128xi1>, vector<1x128xi32>
    %c1_i32_164 = arith.constant 1 : i32
    %471 = vector.broadcast %c1_i32_164 : i32 to vector<1x128xi32>
    %472 = arith.cmpi sge, %5, %471 : vector<1x128xi32>
    %c0_i32_165 = arith.constant 0 : i32
    %473 = vector.broadcast %c0_i32_165 : i32 to vector<1x128xi32>
    %474 = arith.select %472, %470, %473 : vector<1x128xi1>, vector<1x128xi32>
    %c1_166 = arith.constant 1 : index
    %c0_167 = arith.constant 0 : index
    %475 = vector.load %arg7[%c1_166, %c0_167] : memref<8x128xi32, #tpu.memory_space<vmem>>, vector<1x128xi32>
    tpu.vector_store %arg7[%c1_166, %c0_167], %474 {strides = array<i32>} : memref<8x128xi32, #tpu.memory_space<vmem>>, vector<1x128xi32>,
    %c1_168 = arith.constant 1 : index
    %c0_169 = arith.constant 0 : index
    %c0_170 = arith.constant 0 : index
    %476 = vector.load %arg8[%c1_168, %c0_169, %c0_170] : memref<8x4x128xi32, #tpu.memory_space<vmem>>, vector<1x4x128xi32>
    %477 = vector.shape_cast %476 : vector<1x4x128xi32> to vector<4x128xi32>
    %478 = vector.extract_strided_slice %477 {offsets = [0, 0], sizes = [1, 128], strides = [1, 1]} : vector<4x128xi32> to vector<1x128xi32>
    %c1_i32_171 = arith.constant 1 : i32
    %479 = vector.broadcast %c1_i32_171 : i32 to vector<1x128xi32>
    %480 = arith.cmpi eq, %470, %479 : vector<1x128xi32>
    %481 = vector.extract_strided_slice %477 {offsets = [1, 0], sizes = [1, 128], strides = [1, 1]} : vector<4x128xi32> to vector<1x128xi32>
    %482 = arith.select %480, %481, %478 : vector<1x128xi1>, vector<1x128xi32>
    %c2_i32_172 = arith.constant 2 : i32
    %483 = vector.broadcast %c2_i32_172 : i32 to vector<1x128xi32>
    %484 = arith.cmpi eq, %470, %483 : vector<1x128xi32>
    %485 = vector.extract_strided_slice %477 {offsets = [2, 0], sizes = [1, 128], strides = [1, 1]} : vector<4x128xi32> to vector<1x128xi32>
    %486 = arith.select %484, %485, %482 : vector<1x128xi1>, vector<1x128xi32>
    %c3_i32_173 = arith.constant 3 : i32
    %487 = vector.broadcast %c3_i32_173 : i32 to vector<1x128xi32>
    %488 = arith.cmpi eq, %470, %487 : vector<1x128xi32>
    %489 = vector.extract_strided_slice %477 {offsets = [3, 0], sizes = [1, 128], strides = [1, 1]} : vector<4x128xi32> to vector<1x128xi32>
    %490 = arith.select %488, %489, %486 : vector<1x128xi1>, vector<1x128xi32>
    %491 = arith.select %472, %490, %470 : vector<1x128xi1>, vector<1x128xi32>
    %c0_i32_174 = arith.constant 0 : i32
    %492 = vector.broadcast %c0_i32_174 : i32 to vector<1x128xi32>
    %493 = arith.cmpi eq, %5, %492 : vector<1x128xi32>
    %494 = arith.select %493, %323, %491 : vector<1x128xi1>, vector<1x128xi32>
    %c0_i32_175 = arith.constant 0 : i32
    %495 = vector.broadcast %c0_i32_175 : i32 to vector<1x128xi32>
    %496 = arith.cmpi sge, %5, %495 : vector<1x128xi32>
    %c0_i32_176 = arith.constant 0 : i32
    %497 = vector.broadcast %c0_i32_176 : i32 to vector<1x128xi32>
    %498 = arith.select %496, %494, %497 : vector<1x128xi1>, vector<1x128xi32>
    %c0_177 = arith.constant 0 : index
    %c0_178 = arith.constant 0 : index
    %499 = vector.load %arg7[%c0_177, %c0_178] : memref<8x128xi32, #tpu.memory_space<vmem>>, vector<1x128xi32>
    tpu.vector_store %arg7[%c0_177, %c0_178], %498 {strides = array<i32>} : memref<8x128xi32, #tpu.memory_space<vmem>>, vector<1x128xi32>,
    return
  }
  func.func @transform_0(%arg0: i32) -> (i32, i32, i32) {
    %c0_i32 = arith.constant 0 : i32
    %c0_i32_0 = arith.constant 0 : i32
    %c0_i32_1 = arith.constant 0 : i32
    return %c0_i32, %c0_i32_0, %arg0 : i32, i32, i32
  }
  func.func @transform_1(%arg0: i32) -> (i32, i32, i32) {
    %c0_i32 = arith.constant 0 : i32
    %c0_i32_0 = arith.constant 0 : i32
    %c0_i32_1 = arith.constant 0 : i32
    return %c0_i32, %c0_i32_0, %arg0 : i32, i32, i32
  }
  func.func @transform_2(%arg0: i32) -> (i32, i32) {
    %c0_i32 = arith.constant 0 : i32
    %c0_i32_0 = arith.constant 0 : i32
    return %c0_i32, %arg0 : i32, i32
  }
  func.func @transform_3(%arg0: i32) -> (i32, i32) {
    %c0_i32 = arith.constant 0 : i32
    %c0_i32_0 = arith.constant 0 : i32
    %c0_i32_1 = arith.constant 0 : i32
    return %c0_i32, %c0_i32_0 : i32, i32
  }
  func.func @transform_4(%arg0: i32) -> (i32, i32) {
    %c0_i32 = arith.constant 0 : i32
    %c0_i32_0 = arith.constant 0 : i32
    %c0_i32_1 = arith.constant 0 : i32
    return %c0_i32, %c0_i32_0 : i32, i32
  }
  func.func @transform_5(%arg0: i32) -> (i32, i32) {
    %c0_i32 = arith.constant 0 : i32
    %c0_i32_0 = arith.constant 0 : i32
    %c0_i32_1 = arith.constant 0 : i32
    return %c0_i32, %c0_i32_0 : i32, i32
  }
  func.func @transform_6(%arg0: i32) -> (i32, i32) {
    %c0_i32 = arith.constant 0 : i32
    %c0_i32_0 = arith.constant 0 : i32
    return %c0_i32, %arg0 : i32, i32
  }
}

</mosaic_0001>

<llo_original>
// kernel: structured_out_forward.1
$region0: #{structured_out_forward.1}
  #allocation0 [shape = 'u32[]', space=smem, size = 0x4, offset = 0x4, fixed_abs, tag = 'smem constant byte address 0x4 - core index']
  #allocation1 [shape = 'u32[144,128]{1,0:T(1,128)}', space=vmem, size = 0x12000, scoped, tag = 'internal scratch']
  #allocation2 [shape = 's32[8,4,128]{2,1,0:T(4,128)}', space=vmem, size = 0x4000, scoped, tag = 'scratch operand']
  %s0 = inlined_call_operand.vmem [shape: f32[8,4,128], index: 0, kind: input, shape index: {}]
  %s1 = inlined_call_operand.vmem [shape: s32[8,1,128], index: 1, kind: input, shape index: {}]
  %s2 = inlined_call_operand.vmem [shape: s32[1,128], index: 2, kind: input, shape index: {}]
  %s3 = inlined_call_operand.vmem [shape: f32[4,1], index: 3, kind: input, shape index: {}]
  %s4 = inlined_call_operand.vmem [shape: f32[4,1], index: 4, kind: input, shape index: {}]
  %s5 = inlined_call_operand.vmem [shape: f32[4,4], index: 5, kind: input, shape index: {}]
  %s6 = inlined_call_operand.vmem [shape: s32[8,128], index: 6, kind: output, shape index: {}]
  %s7 = sld [smem:[#allocation0]]
  $region34: #{structured_out_forward.1} parent=0
    _
  %s9 = ssub.s32 1, %s7
  %s10 = scalar_select 0, %s9, %s7
  // Predicated region
  $region2: #{structured_out_forward.1} parent=0 // pred_check
    _
  $region3: #{structured_out_forward.1} parent=0 // pred_check_branch
    %12 = sbr.rel (0) target = $region5
  $region4: #{structured_out_forward.1} parent=0 // pred_region
    _
  $region5: #{structured_out_forward.1} parent=0 // pred_fallthru
    _
  // Predicated region
  $region6: #{structured_out_forward.1} parent=0 // pred_check
    _
  $region7: #{structured_out_forward.1} parent=0 // pred_check_branch
    %14 = sbr.rel (0) target = $region9
  $region8: #{structured_out_forward.1} parent=0 // pred_region
    _
  $region9: #{structured_out_forward.1} parent=0 // pred_fallthru
    _
  // Predicated region
  $region10: #{structured_out_forward.1} parent=0 // pred_check
    _
  $region11: #{structured_out_forward.1} parent=0 // pred_check_branch
    %16 = sbr.rel (0) target = $region13
  $region12: #{structured_out_forward.1} parent=0 // pred_region
    _
  $region13: #{structured_out_forward.1} parent=0 // pred_fallthru
    _
  // Predicated region
  $region14: #{structured_out_forward.1} parent=0 // pred_check
    _
  $region15: #{structured_out_forward.1} parent=0 // pred_check_branch
    %18 = sbr.rel (0) target = $region17
  $region16: #{structured_out_forward.1} parent=0 // pred_region
    _
  $region17: #{structured_out_forward.1} parent=0 // pred_fallthru
    _
  // Predicated region
  $region18: #{structured_out_forward.1} parent=0 // pred_check
    _
  $region19: #{structured_out_forward.1} parent=0 // pred_check_branch
    %20 = sbr.rel (0) target = $region21
  $region20: #{structured_out_forward.1} parent=0 // pred_region
    _
  $region21: #{structured_out_forward.1} parent=0 // pred_fallthru
    _
  // Predicated region
  $region22: #{structured_out_forward.1} parent=0 // pred_check
    _
  $region23: #{structured_out_forward.1} parent=0 // pred_check_branch
    %22 = sbr.rel (0) target = $region25
  $region24: #{structured_out_forward.1} parent=0 // pred_region
    _
  $region25: #{structured_out_forward.1} parent=0 // pred_fallthru
    _
  %v23 = vld [vmem:[%s5] sm:$0xf]
  %v24 = vld [vmem:[%s2] sm:$0x1]
  %v25 = vld [vmem:[%s3] sm:$0xf]
  %v26 = vld [vmem:[%s0] sm:$0xf]
  %28 = vset.pattern.permute.xlu0 0
  %29 = vperm.xlu0 %28, %v25
  %v30 = vpop.permute.xlu0 %29
  %v32 = vadd.f32 %v30, %v26
  %s33 = scalar_lea.vmem %s0, 4
  %v34 = vld [vmem:[%s33] sm:$0xf]
  %v35 = vlaneseq
  %v36 = vshrl.u32 %v35, 7
  %v37 = vsub.s32 0, %v36
  %v38 = vrot.slane %v32, %v37
  %40 = vset.pattern.permute.xlu0 0
  %41 = vperm.xlu0 %40, %v23
  %v42 = vpop.permute.xlu0 %41
  %v44 = vadd.f32 %v38, %v42
  %v45 = vlaneseq
  %v46 = vshrl.u32 %v45, 7
  %v47 = vsub.s32 1, %v46
  %v48 = vrot.slane %v32, %v47
  %49 = vset.pattern.permute.xlu0 1
  %50 = vperm.xlu0 %49, %v23
  %v51 = vpop.permute.xlu0 %50
  %v53 = vadd.f32 %v48, %v51
  %vm54 = vcmp.gt.f32.partialorder %v53, %v44
  %v55 = vsel %vm54, %v53, %v44
  %v56 = vsel %vm54, 1, 0
  %v57 = vlaneseq
  %v58 = vshrl.u32 %v57, 7
  %v59 = vsub.s32 2, %v58
  %v60 = vrot.slane %v32, %v59
  %61 = vset.pattern.permute.xlu0 2
  %62 = vperm.xlu0 %61, %v23
  %v63 = vpop.permute.xlu0 %62
  %v65 = vadd.f32 %v60, %v63
  %vm66 = vcmp.gt.f32.partialorder %v65, %v55
  %v67 = vsel %vm66, %v65, %v55
  %v68 = vsel %vm66, 2, %v56
  %v69 = vlaneseq
  %v70 = vshrl.u32 %v69, 7
  %v71 = vsub.s32 3, %v70
  %v72 = vrot.slane %v32, %v71
  %73 = vset.pattern.permute.xlu0 3
  %74 = vperm.xlu0 %73, %v23
  %v75 = vpop.permute.xlu0 %74
  %v77 = vadd.f32 %v72, %v75
  %vm78 = vcmp.gt.f32.partialorder %v77, %v67
  %v79 = vsel %vm78, %v77, %v67
  %v80 = vsel %vm78, 3, %v68
  %s81 = scalar_lea.vmem [#allocation2], 4
  %82 = vst [vmem:[%s81] sm:$0xf] %v80
  %v83 = vadd.f32 %v79, %v34
  %s84 = scalar_lea.vmem %s1, 1
  %v85 = vld [vmem:[%s84] sm:$0x1]
  %vm86 = vcmp.gt.s32.totalorder %v85, 0
  %v87 = vsel %vm86, 1, 0
  %v88 = vlaneseq
  %v89 = vshrl.u32 %v88, 7
  %v90 = vsub.s32 0, %v89
  %v91 = vrot.slane %v87, %v90
  %vm92 = vcmp.eq.s32.totalorder %v91, 1
  %v93 = vsel %vm92, %v83, %v32
  %s94 = scalar_lea.vmem %s0, 8
  %v95 = vld [vmem:[%s94] sm:$0xf]
  %v96 = vlaneseq
  %v97 = vshrl.u32 %v96, 7
  %v98 = vsub.s32 0, %v97
  %v99 = vrot.slane %v93, %v98
  %v100 = vadd.f32 %v99, %v42
  %v101 = vlaneseq
  %v102 = vshrl.u32 %v101, 7
  %v103 = vsub.s32 1, %v102
  %v104 = vrot.slane %v93, %v103
  %v105 = vadd.f32 %v104, %v51
  %vm106 = vcmp.gt.f32.partialorder %v105, %v100
  %v107 = vsel %vm106, %v105, %v100
  %v108 = vsel %vm106, 1, 0
  %v109 = vlaneseq
  %v110 = vshrl.u32 %v109, 7
  %v111 = vsub.s32 2, %v110
  %v112 = vrot.slane %v93, %v111
  %v113 = vadd.f32 %v112, %v63
  %vm114 = vcmp.gt.f32.partialorder %v113, %v107
  %v115 = vsel %vm114, %v113, %v107
  %v116 = vsel %vm114, 2, %v108
  %v117 = vlaneseq
  %v118 = vshrl.u32 %v117, 7
  %v119 = vsub.s32 3, %v118
  %v120 = vrot.slane %v93, %v119
  %v121 = vadd.f32 %v120, %v75
  %vm122 = vcmp.gt.f32.partialorder %v121, %v115
  %v123 = vsel %vm122, %v121, %v115
  %v124 = vsel %vm122, 3, %v116
  %s125 = scalar_lea.vmem [#allocation2], 8
  %126 = vst [vmem:[%s125] sm:$0xf] %v124
  %v127 = vadd.f32 %v123, %v95
  %s128 = scalar_lea.vmem %s1, 2
  %v129 = vld [vmem:[%s128] sm:$0x1]
  %vm130 = vcmp.gt.s32.totalorder %v129, 0
  %v131 = vsel %vm130, 1, 0
  %v132 = vlaneseq
  %v133 = vshrl.u32 %v132, 7
  %v134 = vsub.s32 0, %v133
  %v135 = vrot.slane %v131, %v134
  %vm136 = vcmp.eq.s32.totalorder %v135, 1
  %v137 = vsel %vm136, %v127, %v93
  %s138 = scalar_lea.vmem %s0, 12
  %v139 = vld [vmem:[%s138] sm:$0xf]
  %v140 = vlaneseq
  %v141 = vshrl.u32 %v140, 7
  %v142 = vsub.s32 0, %v141
  %v143 = vrot.slane %v137, %v142
  %v144 = vadd.f32 %v143, %v42
  %v145 = vlaneseq
  %v146 = vshrl.u32 %v145, 7
  %v147 = vsub.s32 1, %v146
  %v148 = vrot.slane %v137, %v147
  %v149 = vadd.f32 %v148, %v51
  %vm150 = vcmp.gt.f32.partialorder %v149, %v144
  %v151 = vsel %vm150, %v149, %v144
  %v152 = vsel %vm150, 1, 0
  %v153 = vlaneseq
  %v154 = vshrl.u32 %v153, 7
  %v155 = vsub.s32 2, %v154
  %v156 = vrot.slane %v137, %v155
  %v157 = vadd.f32 %v156, %v63
  %vm158 = vcmp.gt.f32.partialorder %v157, %v151
  %v159 = vsel %vm158, %v157, %v151
  %v160 = vsel %vm158, 2, %v152
  %v161 = vlaneseq
  %v162 = vshrl.u32 %v161, 7
  %v163 = vsub.s32 3, %v162
  %v164 = vrot.slane %v137, %v163
  %v165 = vadd.f32 %v164, %v75
  %vm166 = vcmp.gt.f32.partialorder %v165, %v159
  %v167 = vsel %vm166, %v165, %v159
  %v168 = vsel %vm166, 3, %v160
  %s169 = scalar_lea.vmem [#allocation2], 12
  %170 = vst [vmem:[%s169] sm:$0xf] %v168
  %v171 = vadd.f32 %v167, %v139
  %s172 = scalar_lea.vmem %s1, 3
  %v173 = vld [vmem:[%s172] sm:$0x1]
  %vm174 = vcmp.gt.s32.totalorder %v173, 0
  %v175 = vsel %vm174, 1, 0
  %v176 = vlaneseq
  %v177 = vshrl.u32 %v176, 7
  %v178 = vsub.s32 0, %v177
  %v179 = vrot.slane %v175, %v178
  %vm180 = vcmp.eq.s32.totalorder %v179, 1
  %v181 = vsel %vm180, %v171, %v137
  %s182 = scalar_lea.vmem %s0, 16
  %v183 = vld [vmem:[%s182] sm:$0xf]
  %v184 = vlaneseq
  %v185 = vshrl.u32 %v184, 7
  %v186 = vsub.s32 0, %v185
  %v187 = vrot.slane %v181, %v186
  %v188 = vadd.f32 %v187, %v42
  %v189 = vlaneseq
  %v190 = vshrl.u32 %v189, 7
  %v191 = vsub.s32 1, %v190
  %v192 = vrot.slane %v181, %v191
  %v193 = vadd.f32 %v192, %v51
  %vm194 = vcmp.gt.f32.partialorder %v193, %v188
  %v195 = vsel %vm194, %v193, %v188
  %v196 = vsel %vm194, 1, 0
  %v197 = vlaneseq
  %v198 = vshrl.u32 %v197, 7
  %v199 = vsub.s32 2, %v198
  %v200 = vrot.slane %v181, %v199
  %v201 = vadd.f32 %v200, %v63
  %vm202 = vcmp.gt.f32.partialorder %v201, %v195
  %v203 = vsel %vm202, %v201, %v195
  %v204 = vsel %vm202, 2, %v196
  %v205 = vlaneseq
  %v206 = vshrl.u32 %v205, 7
  %v207 = vsub.s32 3, %v206
  %v208 = vrot.slane %v181, %v207
  %v209 = vadd.f32 %v208, %v75
  %vm210 = vcmp.gt.f32.partialorder %v209, %v203
  %v211 = vsel %vm210, %v209, %v203
  %v212 = vsel %vm210, 3, %v204
  %s213 = scalar_lea.vmem [#allocation2], 16
  %214 = vst [vmem:[%s213] sm:$0xf] %v212
  %v215 = vadd.f32 %v211, %v183
  %s216 = scalar_lea.vmem %s1, 4
  %v217 = vld [vmem:[%s216] sm:$0x1]
  %vm218 = vcmp.gt.s32.totalorder %v217, 0
  %v219 = vsel %vm218, 1, 0
  %v220 = vlaneseq
  %v221 = vshrl.u32 %v220, 7
  %v222 = vsub.s32 0, %v221
  %v223 = vrot.slane %v219, %v222
  %vm224 = vcmp.eq.s32.totalorder %v223, 1
  %v225 = vsel %vm224, %v215, %v181
  %s226 = scalar_lea.vmem %s0, 20
  %v227 = vld [vmem:[%s226] sm:$0xf]
  %v228 = vlaneseq
  %v229 = vshrl.u32 %v228, 7
  %v230 = vsub.s32 0, %v229
  %v231 = vrot.slane %v225, %v230
  %v232 = vadd.f32 %v231, %v42
  %v233 = vlaneseq
  %v234 = vshrl.u32 %v233, 7
  %v235 = vsub.s32 1, %v234
  %v236 = vrot.slane %v225, %v235
  %v237 = vadd.f32 %v236, %v51
  %vm238 = vcmp.gt.f32.partialorder %v237, %v232
  %v239 = vsel %vm238, %v237, %v232
  %v240 = vsel %vm238, 1, 0
  %v241 = vlaneseq
  %v242 = vshrl.u32 %v241, 7
  %v243 = vsub.s32 2, %v242
  %v244 = vrot.slane %v225, %v243
  %v245 = vadd.f32 %v244, %v63
  %vm246 = vcmp.gt.f32.partialorder %v245, %v239
  %v247 = vsel %vm246, %v245, %v239
  %v248 = vsel %vm246, 2, %v240
  %v249 = vlaneseq
  %v250 = vshrl.u32 %v249, 7
  %v251 = vsub.s32 3, %v250
  %v252 = vrot.slane %v225, %v251
  %v253 = vadd.f32 %v252, %v75
  %vm254 = vcmp.gt.f32.partialorder %v253, %v247
  %v255 = vsel %vm254, %v253, %v247
  %v256 = vsel %vm254, 3, %v248
  %s257 = scalar_lea.vmem [#allocation2], 20
  %258 = vst [vmem:[%s257] sm:$0xf] %v256
  %v259 = vadd.f32 %v255, %v227
  %s260 = scalar_lea.vmem %s1, 5
  %v261 = vld [vmem:[%s260] sm:$0x1]
  %vm262 = vcmp.gt.s32.totalorder %v261, 0
  %v263 = vsel %vm262, 1, 0
  %v264 = vlaneseq
  %v265 = vshrl.u32 %v264, 7
  %v266 = vsub.s32 0, %v265
  %v267 = vrot.slane %v263, %v266
  %vm268 = vcmp.eq.s32.totalorder %v267, 1
  %v269 = vsel %vm268, %v259, %v225
  %s270 = scalar_lea.vmem %s0, 24
  %v271 = vld [vmem:[%s270] sm:$0xf]
  %v272 = vlaneseq
  %v273 = vshrl.u32 %v272, 7
  %v274 = vsub.s32 0, %v273
  %v275 = vrot.slane %v269, %v274
  %v276 = vadd.f32 %v275, %v42
  %v277 = vlaneseq
  %v278 = vshrl.u32 %v277, 7
  %v279 = vsub.s32 1, %v278
  %v280 = vrot.slane %v269, %v279
  %v281 = vadd.f32 %v280, %v51
  %vm282 = vcmp.gt.f32.partialorder %v281, %v276
  %v283 = vsel %vm282, %v281, %v276
  %v284 = vsel %vm282, 1, 0
  %v285 = vlaneseq
  %v286 = vshrl.u32 %v285, 7
  %v287 = vsub.s32 2, %v286
  %v288 = vrot.slane %v269, %v287
  %v289 = vadd.f32 %v288, %v63
  %vm290 = vcmp.gt.f32.partialorder %v289, %v283
  %v291 = vsel %vm290, %v289, %v283
  %v292 = vsel %vm290, 2, %v284
  %v293 = vlaneseq
  %v294 = vshrl.u32 %v293, 7
  %v295 = vsub.s32 3, %v294
  %v296 = vrot.slane %v269, %v295
  %v297 = vadd.f32 %v296, %v75
  %vm298 = vcmp.gt.f32.partialorder %v297, %v291
  %v299 = vsel %vm298, %v297, %v291
  %v300 = vsel %vm298, 3, %v292
  %s301 = scalar_lea.vmem [#allocation2], 24
  %302 = vst [vmem:[%s301] sm:$0xf] %v300
  %v303 = vadd.f32 %v299, %v271
  %s304 = scalar_lea.vmem %s1, 6
  %v305 = vld [vmem:[%s304] sm:$0x1]
  %vm306 = vcmp.gt.s32.totalorder %v305, 0
  %v307 = vsel %vm306, 1, 0
  %v308 = vlaneseq
  %v309 = vshrl.u32 %v308, 7
  %v310 = vsub.s32 0, %v309
  %v311 = vrot.slane %v307, %v310
  %vm312 = vcmp.eq.s32.totalorder %v311, 1
  %v313 = vsel %vm312, %v303, %v269
  %s314 = scalar_lea.vmem %s0, 28
  %v315 = vld [vmem:[%s314] sm:$0xf]
  %v316 = vlaneseq
  %v317 = vshrl.u32 %v316, 7
  %v318 = vsub.s32 0, %v317
  %v319 = vrot.slane %v313, %v318
  %v320 = vadd.f32 %v319, %v42
  %v321 = vlaneseq
  %v322 = vshrl.u32 %v321, 7
  %v323 = vsub.s32 1, %v322
  %v324 = vrot.slane %v313, %v323
  %v325 = vadd.f32 %v324, %v51
  %vm326 = vcmp.gt.f32.partialorder %v325, %v320
  %v327 = vsel %vm326, %v325, %v320
  %v328 = vsel %vm326, 1, 0
  %v329 = vlaneseq
  %v330 = vshrl.u32 %v329, 7
  %v331 = vsub.s32 2, %v330
  %v332 = vrot.slane %v313, %v331
  %v333 = vadd.f32 %v332, %v63
  %vm334 = vcmp.gt.f32.partialorder %v333, %v327
  %v335 = vsel %vm334, %v333, %v327
  %v336 = vsel %vm334, 2, %v328
  %v337 = vlaneseq
  %v338 = vshrl.u32 %v337, 7
  %v339 = vsub.s32 3, %v338
  %v340 = vrot.slane %v313, %v339
  %v341 = vadd.f32 %v340, %v75
  %vm342 = vcmp.gt.f32.partialorder %v341, %v335
  %v343 = vsel %vm342, %v341, %v335
  %v344 = vsel %vm342, 3, %v336
  %s345 = scalar_lea.vmem [#allocation2], 28
  %346 = vst [vmem:[%s345] sm:$0xf] %v344
  %v347 = vadd.f32 %v343, %v315
  %s348 = scalar_lea.vmem %s1, 7
  %v349 = vld [vmem:[%s348] sm:$0x1]
  %vm350 = vcmp.gt.s32.totalorder %v349, 0
  %v351 = vsel %vm350, 1, 0
  %v352 = vlaneseq
  %v353 = vshrl.u32 %v352, 7
  %v354 = vsub.s32 0, %v353
  %v355 = vrot.slane %v351, %v354
  %vm356 = vcmp.eq.s32.totalorder %v355, 1
  %v357 = vsel %vm356, %v347, %v313
  %v358 = vld [vmem:[%s4] sm:$0xf]
  %360 = vset.pattern.permute.xlu0 0
  %361 = vperm.xlu0 %360, %v358
  %v362 = vpop.permute.xlu0 %361
  %v364 = vadd.f32 %v357, %v362
  %v366 = vrot.slane %v364, 7
  %vm368 = vcmp.gt.f32.partialorder %v364, %v366
  %v369 = vsel %vm368, %v364, %v366
  %v370 = vsel %vm368, 1, 0
  %v372 = vrot.slane %v369, 7
  %vm374 = vcmp.gt.f32.partialorder %v364, %v372
  %v375 = vsel %vm374, %v364, %v372
  %v376 = vrot.slane %v370, 7
  %v377 = vsel %vm374, 2, %v376
  %v379 = vrot.slane %v375, 7
  %vm381 = vcmp.gt.f32.partialorder %v364, %v379
  %v382 = vrot.slane %v377, 7
  %v383 = vsel %vm381, 3, %v382
  %vm384 = vcmp.ge.s32.totalorder %v24, 7
  %v386 = vunpack.c.l.s4 1966171168
  %v387 = vunpack.c.0.s8 %v386
  %v388 = vlaneseq
  %v389 = vshrl.u32 %v388, 7
  %v390 = vsub.s32 %v387, %v389
  %v391 = vrot.slane %v383, %v390
  %v392 = vcombine.high %v391, %v391
  %v394 = vunpack.c.l.s4 1966171168
  %v395 = vunpack.c.0.s8 %v394
  %v396 = vlaneseq
  %v397 = vshrl.u32 %v396, 7
  %v398 = vsub.s32 %v395, %v397
  %v399 = vrot.slane %v392, %v398
  %v400 = vcombine.high %v399, %v399
  %v401 = vsel %vm384, %v400, 0
  %402 = vst [vmem:[%s6 + $0x7] sm:$0x1] %v401
  %v403 = vld [vmem:[%s345] sm:$0xf]
  %vm404 = vcmp.eq.s32.totalorder %v383, 1
  %v405 = vrot.slane %v403, 6
  %v406 = vrot.slane %v403, 5
  %v407 = vsel %vm404, %v405, %v406
  %vm408 = vcmp.eq.s32.totalorder %v383, 2
  %v409 = vrot.slane %v403, 7
  %v410 = vsel %vm408, %v409, %v407
  %vm411 = vcmp.eq.s32.totalorder %v383, 3
  %v412 = vsel %vm411, %v403, %v410
  %v414 = vunpack.c.l.s4 1966171168
  %v415 = vunpack.c.0.s8 %v414
  %v416 = vlaneseq
  %v417 = vshrl.u32 %v416, 7
  %v418 = vsub.s32 %v415, %v417
  %v419 = vrot.slane %v412, %v418
  %v420 = vcombine.high %v419, %v419
  %v422 = vunpack.c.l.s4 1966171168
  %v423 = vunpack.c.0.s8 %v422
  %v424 = vlaneseq
  %v425 = vshrl.u32 %v424, 7
  %v426 = vsub.s32 %v423, %v425
  %v427 = vrot.slane %v420, %v426
  %v428 = vcombine.high %v427, %v427
  %v429 = vsel %vm384, %v428, %v400
  %vm430 = vcmp.eq.s32.totalorder %v24, 6
  %v431 = vsel %vm430, %v400, %v429
  %vm432 = vcmp.ge.s32.totalorder %v24, 6
  %v433 = vsel %vm432, %v431, 0
  %434 = vst [vmem:[%s6 + $0x6] sm:$0x1] %v433
  %v435 = vld [vmem:[%s301] sm:$0xf]
  %vm436 = vcmp.eq.s32.totalorder %v431, 1
  %v438 = vunpack.c.l.s4 1966171168
  %v439 = vunpack.c.0.s8 %v438
  %v440 = vlaneseq
  %v441 = vshrl.u32 %v440, 7
  %v442 = vsub.s32 %v439, %v441
  %v443 = vrot.slane %v435, %v442
  %v444 = vcombine.high %v443, %v443
  %v446 = vunpack.c.l.s4 1966171168
  %v447 = vunpack.c.0.s8 %v446
  %v448 = vlaneseq
  %v449 = vshrl.u32 %v448, 7
  %v450 = vsub.s32 %v447, %v449
  %v451 = vrot.slane %v443, %v450
  %v453 = vunpack.c.l.s4 1966171168
  %v454 = vunpack.c.0.s8 %v453
  %v455 = vlaneseq
  %v456 = vshrl.u32 %v455, 7
  %v457 = vsub.s32 %v454, %v456
  %v458 = vrot.slane %v444, %v457
  %v459 = vsel %vm436, %v458, %v435
  %vm460 = vcmp.eq.s32.totalorder %v431, 2
  %v461 = vcombine.high %v451, %v451
  %v462 = vsel %vm460, %v461, %v459
  %vm463 = vcmp.eq.s32.totalorder %v431, 3
  %v464 = vcombine.high %v458, %v458
  %v465 = vsel %vm463, %v464, %v462
  %v466 = vsel %vm432, %v465, %v431
  %vm467 = vcmp.eq.s32.totalorder %v24, 5
  %v468 = vsel %vm467, %v400, %v466
  %vm469 = vcmp.ge.s32.totalorder %v24, 5
  %v470 = vsel %vm469, %v468, 0
  %471 = vst [vmem:[%s6 + $0x5] sm:$0x1] %v470
  %v472 = vld [vmem:[%s257] sm:$0xf]
  %vm473 = vcmp.eq.s32.totalorder %v468, 1
  %v475 = vunpack.c.l.s4 1966171168
  %v476 = vunpack.c.0.s8 %v475
  %v477 = vlaneseq
  %v478 = vshrl.u32 %v477, 7
  %v479 = vsub.s32 %v476, %v478
  %v480 = vrot.slane %v472, %v479
  %v481 = vcombine.high %v480, %v480
  %v483 = vunpack.c.l.s4 1966171168
  %v484 = vunpack.c.0.s8 %v483
  %v485 = vlaneseq
  %v486 = vshrl.u32 %v485, 7
  %v487 = vsub.s32 %v484, %v486
  %v488 = vrot.slane %v480, %v487
  %v490 = vunpack.c.l.s4 1966171168
  %v491 = vunpack.c.0.s8 %v490
  %v492 = vlaneseq
  %v493 = vshrl.u32 %v492, 7
  %v494 = vsub.s32 %v491, %v493
  %v495 = vrot.slane %v481, %v494
  %v496 = vsel %vm473, %v495, %v472
  %vm497 = vcmp.eq.s32.totalorder %v468, 2
  %v498 = vcombine.high %v488, %v488
  %v499 = vsel %vm497, %v498, %v496
  %vm500 = vcmp.eq.s32.totalorder %v468, 3
  %v501 = vcombine.high %v495, %v495
  %v502 = vsel %vm500, %v501, %v499
  %v503 = vsel %vm469, %v502, %v468
  %vm504 = vcmp.eq.s32.totalorder %v24, 4
  %v505 = vsel %vm504, %v400, %v503
  %vm506 = vcmp.ge.s32.totalorder %v24, 4
  %v507 = vsel %vm506, %v505, 0
  %508 = vst [vmem:[%s6 + $0x4] sm:$0x1] %v507
  %v509 = vld [vmem:[%s213] sm:$0xf]
  %vm510 = vcmp.eq.s32.totalorder %v505, 1
  %v512 = vunpack.c.l.s4 1966171168
  %v513 = vunpack.c.0.s8 %v512
  %v514 = vlaneseq
  %v515 = vshrl.u32 %v514, 7
  %v516 = vsub.s32 %v513, %v515
  %v517 = vrot.slane %v509, %v516
  %v518 = vcombine.high %v517, %v517
  %v520 = vunpack.c.l.s4 1966171168
  %v521 = vunpack.c.0.s8 %v520
  %v522 = vlaneseq
  %v523 = vshrl.u32 %v522, 7
  %v524 = vsub.s32 %v521, %v523
  %v525 = vrot.slane %v517, %v524
  %v527 = vunpack.c.l.s4 1966171168
  %v528 = vunpack.c.0.s8 %v527
  %v529 = vlaneseq
  %v530 = vshrl.u32 %v529, 7
  %v531 = vsub.s32 %v528, %v530
  %v532 = vrot.slane %v518, %v531
  %v533 = vsel %vm510, %v532, %v509
  %vm534 = vcmp.eq.s32.totalorder %v505, 2
  %v535 = vcombine.high %v525, %v525
  %v536 = vsel %vm534, %v535, %v533
  %vm537 = vcmp.eq.s32.totalorder %v505, 3
  %v538 = vcombine.high %v532, %v532
  %v539 = vsel %vm537, %v538, %v536
  %v540 = vsel %vm506, %v539, %v505
  %vm541 = vcmp.eq.s32.totalorder %v24, 3
  %v542 = vsel %vm541, %v400, %v540
  %vm543 = vcmp.ge.s32.totalorder %v24, 3
  %v544 = vsel %vm543, %v542, 0
  %545 = vst [vmem:[%s6 + $0x3] sm:$0x1] %v544
  %v546 = vld [vmem:[%s169] sm:$0xf]
  %vm547 = vcmp.eq.s32.totalorder %v542, 1
  %v549 = vunpack.c.l.s4 1966171168
  %v550 = vunpack.c.0.s8 %v549
  %v551 = vlaneseq
  %v552 = vshrl.u32 %v551, 7
  %v553 = vsub.s32 %v550, %v552
  %v554 = vrot.slane %v546, %v553
  %v555 = vcombine.high %v554, %v554
  %v557 = vunpack.c.l.s4 1966171168
  %v558 = vunpack.c.0.s8 %v557
  %v559 = vlaneseq
  %v560 = vshrl.u32 %v559, 7
  %v561 = vsub.s32 %v558, %v560
  %v562 = vrot.slane %v554, %v561
  %v564 = vunpack.c.l.s4 1966171168
  %v565 = vunpack.c.0.s8 %v564
  %v566 = vlaneseq
  %v567 = vshrl.u32 %v566, 7
  %v568 = vsub.s32 %v565, %v567
  %v569 = vrot.slane %v555, %v568
  %v570 = vsel %vm547, %v569, %v546
  %vm571 = vcmp.eq.s32.totalorder %v542, 2
  %v572 = vcombine.high %v562, %v562
  %v573 = vsel %vm571, %v572, %v570
  %vm574 = vcmp.eq.s32.totalorder %v542, 3
  %v575 = vcombine.high %v569, %v569
  %v576 = vsel %vm574, %v575, %v573
  %v577 = vsel %vm543, %v576, %v542
  %vm578 = vcmp.eq.s32.totalorder %v24, 2
  %v579 = vsel %vm578, %v400, %v577
  %vm580 = vcmp.ge.s32.totalorder %v24, 2
  %v581 = vsel %vm580, %v579, 0
  %582 = vst [vmem:[%s6 + $0x2] sm:$0x1] %v581
  %v583 = vld [vmem:[%s125] sm:$0xf]
  %vm584 = vcmp.eq.s32.totalorder %v579, 1
  %v586 = vunpack.c.l.s4 1966171168
  %v587 = vunpack.c.0.s8 %v586
  %v588 = vlaneseq
  %v589 = vshrl.u32 %v588, 7
  %v590 = vsub.s32 %v587, %v589
  %v591 = vrot.slane %v583, %v590
  %v592 = vcombine.high %v591, %v591
  %v594 = vunpack.c.l.s4 1966171168
  %v595 = vunpack.c.0.s8 %v594
  %v596 = vlaneseq
  %v597 = vshrl.u32 %v596, 7
  %v598 = vsub.s32 %v595, %v597
  %v599 = vrot.slane %v591, %v598
  %v601 = vunpack.c.l.s4 1966171168
  %v602 = vunpack.c.0.s8 %v601
  %v603 = vlaneseq
  %v604 = vshrl.u32 %v603, 7
  %v605 = vsub.s32 %v602, %v604
  %v606 = vrot.slane %v592, %v605
  %v607 = vsel %vm584, %v606, %v583
  %vm608 = vcmp.eq.s32.totalorder %v579, 2
  %v609 = vcombine.high %v599, %v599
  %v610 = vsel %vm608, %v609, %v607
  %vm611 = vcmp.eq.s32.totalorder %v579, 3
  %v612 = vcombine.high %v606, %v606
  %v613 = vsel %vm611, %v612, %v610
  %v614 = vsel %vm580, %v613, %v579
  %vm615 = vcmp.eq.s32.totalorder %v24, 1
  %v616 = vsel %vm615, %v400, %v614
  %vm617 = vcmp.ge.s32.totalorder %v24, 1
  %v618 = vsel %vm617, %v616, 0
  %619 = vst [vmem:[%s6 + $0x1] sm:$0x1] %v618
  %v620 = vld [vmem:[%s81] sm:$0xf]
  %vm621 = vcmp.eq.s32.totalorder %v616, 1
  %v623 = vunpack.c.l.s4 1966171168
  %v624 = vunpack.c.0.s8 %v623
  %v625 = vlaneseq
  %v626 = vshrl.u32 %v625, 7
  %v627 = vsub.s32 %v624, %v626
  %v628 = vrot.slane %v620, %v627
  %v629 = vcombine.high %v628, %v628
  %v631 = vunpack.c.l.s4 1966171168
  %v632 = vunpack.c.0.s8 %v631
  %v633 = vlaneseq
  %v634 = vshrl.u32 %v633, 7
  %v635 = vsub.s32 %v632, %v634
  %v636 = vrot.slane %v628, %v635
  %v638 = vunpack.c.l.s4 1966171168
  %v639 = vunpack.c.0.s8 %v638
  %v640 = vlaneseq
  %v641 = vshrl.u32 %v640, 7
  %v642 = vsub.s32 %v639, %v641
  %v643 = vrot.slane %v629, %v642
  %v644 = vsel %vm621, %v643, %v620
  %vm645 = vcmp.eq.s32.totalorder %v616, 2
  %v646 = vcombine.high %v636, %v636
  %v647 = vsel %vm645, %v646, %v644
  %vm648 = vcmp.eq.s32.totalorder %v616, 3
  %v649 = vcombine.high %v643, %v643
  %v650 = vsel %vm648, %v649, %v647
  %v651 = vsel %vm617, %v650, %v616
  %vm652 = vcmp.eq.s32.totalorder %v24, 0
  %v653 = vsel %vm652, %v400, %v651
  %vm654 = vcmp.ge.s32.totalorder %v24, 0
  %v655 = vsel %vm654, %v653, 0
  %656 = vst [vmem:[%s6] sm:$0x1] %v655
  // Predicated region
  $region26: #{structured_out_forward.1} parent=0 // pred_check
    _
  $region27: #{structured_out_forward.1} parent=0 // pred_check_branch
    %658 = sbr.rel (0) target = $region29
  $region28: #{structured_out_forward.1} parent=0 // pred_region
    _
  $region29: #{structured_out_forward.1} parent=0 // pred_fallthru
    _
  // Predicated region
  $region30: #{structured_out_forward.1} parent=0 // pred_check
    _
  $region31: #{structured_out_forward.1} parent=0 // pred_check_branch
    %660 = sbr.rel (0) target = $region33
  $region32: #{structured_out_forward.1} parent=0 // pred_region
    _
  $region33: #{structured_out_forward.1} parent=0 // pred_fallthru
    _

</llo_original>
